<compile_context>
chip_gen: v7x
topology: tpu7x:2x2x1
jax: 0.10.0
libtpu: 0.0.40
codegen_flags: <defaults>
</compile_context>

<pallas_src>
import math
from functools import partial

import jax
import jax.numpy as jnp
from jax import lax
from jax.experimental import pallas as pl
from jax.experimental.pallas import tpu as pltpu

THRESHOLD = 1.0   # snntorch Leaky default threshold
_MAX_UNROLL = 8   # full Python unroll up to this many slabs per grid step


def spiking_ff_kernel(x_ref, w1_ref, w2_ref, out_ref, *, block_bs):
    # Weights are resident across the whole grid (constant index_map), bf16.
    w1 = w1_ref[...]          # (H, E)
    w2 = w2_ref[...]          # (E, H)

    def slab(n):
        x_n = x_ref[n].astype(jnp.bfloat16)                               # (E, F)
        # layer1 Linear (MXU) + fresh-state Leaky LIF -> single compare
        syn1 = jnp.dot(w1, x_n, preferred_element_type=jnp.float32)       # (H, F) f32
        spk1 = (syn1 > THRESHOLD).astype(jnp.float32)                     # 0/1
        # FF-level Leaky LIF (beta=0.9, mem=0) -> single compare
        spk_mid = (spk1 > THRESHOLD).astype(jnp.bfloat16)                 # 0/1 bf16 for MXU
        # layer2 Linear (MXU) + fresh-state Leaky LIF -> single compare
        syn2 = jnp.dot(w2, spk_mid, preferred_element_type=jnp.float32)   # (E, F) f32
        out_ref[n] = (syn2 > THRESHOLD).astype(out_ref.dtype)             # lane-dense store

    if block_bs <= _MAX_UNROLL:
        for n in range(block_bs):          # fully unrolled, static indices
            slab(n)
    else:
        def loop_body(n, carry):
            slab(n)
            return carry
        lax.fori_loop(0, block_bs, loop_body, 0, unroll=_MAX_UNROLL)


def _pick_block_bs(BS, slab_bytes, budget_bytes):
    """Slabs per grid step.  Budget is per single buffer of (input + output) bytes; the
    pipeline double-buffers on top of it.  Prefers a grid of >= 2 (even when possible) so the
    single 'parallel' axis can shard across both v7x TensorCores."""
    cap = max(1, budget_bytes // max(slab_bytes, 1))
    if BS <= cap:
        return BS if BS < 2 else pl.cdiv(BS, 2)      # split into 2 blocks when possible
    nblocks = pl.cdiv(BS, cap)
    if nblocks % 2:                                   # prefer an even block count (v7x)
        nblocks += 1
    return max(1, pl.cdiv(BS, nblocks))


def spiking_feedforward(x, w1, w2, *, lif_decay_rate, beta=0.9, block_bs=None,
                        out_dtype=jnp.bfloat16, block_budget_bytes=3 << 20):
    """x: (B, S, E, F) float32.  w1: (H, E) = layer1.fc.weight, w2: (E, H) = layer2.fc.weight
    (native PyTorch (out, in) layout).  Returns (B, S, E, F) spikes (fresh-state forward).
    lif_decay_rate / beta are accepted for interface fidelity; with fresh (zero) membrane
    state they cancel out of the math exactly."""
    del lif_decay_rate, beta  # mem_prev == 0 -> no effect on the fresh-state forward
    B, S, E, F = x.shape
    H, E1 = w1.shape
    assert E1 == E and w2.shape == (E, H)

    BS = B * S
    x3 = x.reshape(BS, E, F)                     # free reshape — no transpose anywhere

    slab_bytes = E * F * (x.dtype.itemsize + jnp.dtype(out_dtype).itemsize)
    if block_bs is None:
        block_bs = _pick_block_bs(BS, slab_bytes, block_budget_bytes)
    grid_n = pl.cdiv(BS, block_bs)
    padded_bs = grid_n * block_bs
    if padded_bs != BS:                          # ragged BS: zero-pad (spikes of 0-input are 0)
        x3 = jnp.pad(x3, ((0, padded_bs - BS), (0, 0), (0, 0)))

    w1b = w1.astype(jnp.bfloat16)
    w2b = w2.astype(jnp.bfloat16)

    kernel = partial(spiking_ff_kernel, block_bs=block_bs)

    out3 = pl.pallas_call(
        kernel,
        out_shape=jax.ShapeDtypeStruct((padded_bs, E, F), out_dtype),
        grid_spec=pltpu.PrefetchScalarGridSpec(
            num_scalar_prefetch=0,
            grid=(grid_n,),
            in_specs=[
                pl.BlockSpec((block_bs, E, F), lambda i: (i, 0, 0)),   # x slabs (streamed)
                pl.BlockSpec((H, E), lambda i: (0, 0)),                # W1 (resident)
                pl.BlockSpec((E, H), lambda i: (0, 0)),                # W2 (resident)
            ],
            out_specs=pl.BlockSpec((block_bs, E, F), lambda i: (i, 0, 0)),
        ),
        # Blocks are sized to sit comfortably under every generation's default scoped VMEM
        # (v5e 16 MiB / v6e+v7x 32 MiB), so no vmem_limit_bytes override is needed.
        compiler_params=pltpu.CompilerParams(dimension_semantics=("parallel",)),
    )(x3, w1b, w2b)

    if padded_bs != BS:
        out3 = out3[:BS]
    return out3.reshape(B, S, E, F)              # free reshape back to (B, S, E, F)


# ----------------------------- pure-JAX reference (PyTorch math) -----------------------------
def _reference(x, w1, w2, *, lif_decay_rate, beta=0.9):
    """Full (un-collapsed) snntorch Leaky math on the module's permute/view data path, with the
    same bf16 matmul inputs as the kernel.  Validates the fresh-state algebraic collapse."""
    B, S, E, F = x.shape
    H = w1.shape[0]

    def lif(syn, mem_prev, b):
        reset = (mem_prev > THRESHOLD).astype(jnp.float32)
        mem = b * mem_prev + syn - reset * THRESHOLD
        return (mem > THRESHOLD).astype(jnp.float32), mem

    xr = jnp.transpose(x, (0, 1, 3, 2)).reshape(-1, E)
    syn1 = jnp.dot(xr.astype(jnp.bfloat16), w1.astype(jnp.bfloat16).T,
                   preferred_element_type=jnp.float32)
    spk1, _ = lif(syn1, jnp.zeros_like(syn1) * lif_decay_rate, beta)
    a = jnp.transpose(spk1.reshape(B, S, F, H), (0, 1, 3, 2))
    spk_mid, _ = lif(a, jnp.zeros_like(a), 0.9)
    sr = jnp.transpose(spk_mid, (0, 1, 3, 2)).reshape(-1, H)
    syn2 = jnp.dot(sr.astype(jnp.bfloat16), w2.astype(jnp.bfloat16).T,
                   preferred_element_type=jnp.float32)
    spk2, _ = lif(syn2, jnp.zeros_like(syn2) * lif_decay_rate, beta)
    return jnp.transpose(spk2.reshape(B, S, F, E), (0, 1, 3, 2))


if __name__ == "__main__":
    # params dict analog (small, lane-friendly shapes)
    B, S = 2, 4                 # batch, seq_len
    E = 64                      # embedding_dim
    F = 128                     # flattened_dim (= num_neurons_per_dim); multiple of 128 -> lane-dense
    H = 4 * E                   # hidden width of layer1
    LIF_DECAY_RATE = 0.95

    key = jax.random.PRNGKey(0)
    kx, k1, k2 = jax.random.split(key, 3)

    x = jax.random.normal(kx, (B, S, E, F), dtype=jnp.float32) * 2.0

    # PyTorch-style Linear weights in native (out, in) layout.
    b1 = 1.0 / math.sqrt(E)
    b2 = 1.0 / math.sqrt(H)
    w1 = jax.random.uniform(k1, (H, E), minval=-b1, maxval=b1, dtype=jnp.float32)
    w2 = jax.random.uniform(k2, (E, H), minval=-b2, maxval=b2, dtype=jnp.float32)

    out = spiking_feedforward(x, w1, w2, lif_decay_rate=LIF_DECAY_RATE, beta=0.9)
    jax.block_until_ready(out)

    assert out.shape == (B, S, E, F)
    ref = _reference(x, w1, w2, lif_decay_rate=LIF_DECAY_RATE, beta=0.9)
    # Spike values are exactly 0/1, so the bf16 output compares exactly against the f32 reference.
    assert bool(jnp.all(out.astype(jnp.float32) == ref)), "kernel output does not match reference"

    print("KERNEL_OK")
</pallas_src>

<mosaic_0001>
module attributes {stable_mosaic.version = 11 : i64} {
  func.func @spiking_ff_kernel(%arg0: i32, %arg1: memref<4x64x128xf32, #tpu.memory_space<vmem>>, %arg2: memref<256x64xbf16, #tpu.memory_space<vmem>>, %arg3: memref<64x256xbf16, #tpu.memory_space<vmem>>, %arg4: memref<4x64x128xbf16, #tpu.memory_space<vmem>>) attributes {dimension_semantics = [#tpu.dimension_semantics<parallel>], iteration_bounds = array<i64: 2>, scalar_prefetch = 0 : i64, scratch_operands = 0 : i64, tpu.core_type = #tpu.core_type<tc>, window_params = [{transform_indices = @transform_0, window_bounds = array<i64: 4, 64, 128>}, {pipeline_mode = #tpu.pipeline_mode<synchronous>, transform_indices = @transform_1, window_bounds = array<i64: 256, 64>}, {pipeline_mode = #tpu.pipeline_mode<synchronous>, transform_indices = @transform_2, window_bounds = array<i64: 64, 256>}, {transform_indices = @transform_3, window_bounds = array<i64: 4, 64, 128>}]} {
    %c0 = arith.constant 0 : index
    %c0_0 = arith.constant 0 : index
    %0 = vector.load %arg2[%c0, %c0_0] : memref<256x64xbf16, #tpu.memory_space<vmem>>, vector<256x64xbf16>
    %c0_1 = arith.constant 0 : index
    %c0_2 = arith.constant 0 : index
    %1 = vector.load %arg3[%c0_1, %c0_2] : memref<64x256xbf16, #tpu.memory_space<vmem>>, vector<64x256xbf16>
    %c0_3 = arith.constant 0 : index
    %c0_4 = arith.constant 0 : index
    %c0_5 = arith.constant 0 : index
    %2 = vector.load %arg1[%c0_3, %c0_4, %c0_5] : memref<4x64x128xf32, #tpu.memory_space<vmem>>, vector<1x64x128xf32>
    %3 = vector.shape_cast %2 : vector<1x64x128xf32> to vector<64x128xf32>
    %4 = arith.truncf %3 : vector<64x128xf32> to vector<64x128xbf16>
    %cst = arith.constant dense<0.000000e+00> : vector<256x128xf32>
    %5 = tpu.matmul %0, %4, %cst {dimension_numbers = #tpu.dot_dimension_numbers<[1], [0], [0], [1], [0, 0, 1, 1], [], []>} : vector<256x64xbf16>, vector<64x128xbf16>, vector<256x128xf32> -> vector<256x128xf32>
    %cst_6 = arith.constant 1.000000e+00 : f32
    %6 = vector.broadcast %cst_6 : f32 to vector<256x128xf32>
    %7 = arith.cmpf ogt, %5, %6 : vector<256x128xf32>
    %8 = arith.extui %7 : vector<256x128xi1> to vector<256x128xi32>
    %9 = arith.sitofp %8 : vector<256x128xi32> to vector<256x128xf32>
    %cst_7 = arith.constant 1.000000e+00 : f32
    %10 = vector.broadcast %cst_7 : f32 to vector<256x128xf32>
    %11 = arith.cmpf ogt, %9, %10 : vector<256x128xf32>
    %12 = arith.extui %11 : vector<256x128xi1> to vector<256x128xi32>
    %13 = arith.sitofp %12 : vector<256x128xi32> to vector<256x128xf32>
    %14 = arith.truncf %13 : vector<256x128xf32> to vector<256x128xbf16>
    %cst_8 = arith.constant dense<0.000000e+00> : vector<64x128xf32>
    %15 = tpu.matmul %1, %14, %cst_8 {dimension_numbers = #tpu.dot_dimension_numbers<[1], [0], [0], [1], [0, 0, 1, 1], [], []>} : vector<64x256xbf16>, vector<256x128xbf16>, vector<64x128xf32> -> vector<64x128xf32>
    %cst_9 = arith.constant 1.000000e+00 : f32
    %16 = vector.broadcast %cst_9 : f32 to vector<64x128xf32>
    %17 = arith.cmpf ogt, %15, %16 : vector<64x128xf32>
    %18 = arith.extui %17 : vector<64x128xi1> to vector<64x128xi32>
    %19 = arith.sitofp %18 : vector<64x128xi32> to vector<64x128xf32>
    %20 = arith.truncf %19 : vector<64x128xf32> to vector<64x128xbf16>
    %c0_10 = arith.constant 0 : index
    %c0_11 = arith.constant 0 : index
    %c0_12 = arith.constant 0 : index
    %21 = vector.load %arg4[%c0_10, %c0_11, %c0_12] : memref<4x64x128xbf16, #tpu.memory_space<vmem>>, vector<1x64x128xbf16>
    %22 = vector.shape_cast %21 : vector<1x64x128xbf16> to vector<64x128xbf16>
    %23 = vector.shape_cast %20 : vector<64x128xbf16> to vector<1x64x128xbf16>
    tpu.vector_store %arg4[%c0_10, %c0_11, %c0_12], %23 {strides = array<i32>} : memref<4x64x128xbf16, #tpu.memory_space<vmem>>, vector<1x64x128xbf16>,
    %c1 = arith.constant 1 : index
    %c0_13 = arith.constant 0 : index
    %c0_14 = arith.constant 0 : index
    %24 = vector.load %arg1[%c1, %c0_13, %c0_14] : memref<4x64x128xf32, #tpu.memory_space<vmem>>, vector<1x64x128xf32>
    %25 = vector.shape_cast %24 : vector<1x64x128xf32> to vector<64x128xf32>
    %26 = arith.truncf %25 : vector<64x128xf32> to vector<64x128xbf16>
    %cst_15 = arith.constant dense<0.000000e+00> : vector<256x128xf32>
    %27 = tpu.matmul %0, %26, %cst_15 {dimension_numbers = #tpu.dot_dimension_numbers<[1], [0], [0], [1], [0, 0, 1, 1], [], []>} : vector<256x64xbf16>, vector<64x128xbf16>, vector<256x128xf32> -> vector<256x128xf32>
    %cst_16 = arith.constant 1.000000e+00 : f32
    %28 = vector.broadcast %cst_16 : f32 to vector<256x128xf32>
    %29 = arith.cmpf ogt, %27, %28 : vector<256x128xf32>
    %30 = arith.extui %29 : vector<256x128xi1> to vector<256x128xi32>
    %31 = arith.sitofp %30 : vector<256x128xi32> to vector<256x128xf32>
    %cst_17 = arith.constant 1.000000e+00 : f32
    %32 = vector.broadcast %cst_17 : f32 to vector<256x128xf32>
    %33 = arith.cmpf ogt, %31, %32 : vector<256x128xf32>
    %34 = arith.extui %33 : vector<256x128xi1> to vector<256x128xi32>
    %35 = arith.sitofp %34 : vector<256x128xi32> to vector<256x128xf32>
    %36 = arith.truncf %35 : vector<256x128xf32> to vector<256x128xbf16>
    %cst_18 = arith.constant dense<0.000000e+00> : vector<64x128xf32>
    %37 = tpu.matmul %1, %36, %cst_18 {dimension_numbers = #tpu.dot_dimension_numbers<[1], [0], [0], [1], [0, 0, 1, 1], [], []>} : vector<64x256xbf16>, vector<256x128xbf16>, vector<64x128xf32> -> vector<64x128xf32>
    %cst_19 = arith.constant 1.000000e+00 : f32
    %38 = vector.broadcast %cst_19 : f32 to vector<64x128xf32>
    %39 = arith.cmpf ogt, %37, %38 : vector<64x128xf32>
    %40 = arith.extui %39 : vector<64x128xi1> to vector<64x128xi32>
    %41 = arith.sitofp %40 : vector<64x128xi32> to vector<64x128xf32>
    %42 = arith.truncf %41 : vector<64x128xf32> to vector<64x128xbf16>
    %c1_20 = arith.constant 1 : index
    %c0_21 = arith.constant 0 : index
    %c0_22 = arith.constant 0 : index
    %43 = vector.load %arg4[%c1_20, %c0_21, %c0_22] : memref<4x64x128xbf16, #tpu.memory_space<vmem>>, vector<1x64x128xbf16>
    %44 = vector.shape_cast %43 : vector<1x64x128xbf16> to vector<64x128xbf16>
    %45 = vector.shape_cast %42 : vector<64x128xbf16> to vector<1x64x128xbf16>
    tpu.vector_store %arg4[%c1_20, %c0_21, %c0_22], %45 {strides = array<i32>} : memref<4x64x128xbf16, #tpu.memory_space<vmem>>, vector<1x64x128xbf16>,
    %c2 = arith.constant 2 : index
    %c0_23 = arith.constant 0 : index
    %c0_24 = arith.constant 0 : index
    %46 = vector.load %arg1[%c2, %c0_23, %c0_24] : memref<4x64x128xf32, #tpu.memory_space<vmem>>, vector<1x64x128xf32>
    %47 = vector.shape_cast %46 : vector<1x64x128xf32> to vector<64x128xf32>
    %48 = arith.truncf %47 : vector<64x128xf32> to vector<64x128xbf16>
    %cst_25 = arith.constant dense<0.000000e+00> : vector<256x128xf32>
    %49 = tpu.matmul %0, %48, %cst_25 {dimension_numbers = #tpu.dot_dimension_numbers<[1], [0], [0], [1], [0, 0, 1, 1], [], []>} : vector<256x64xbf16>, vector<64x128xbf16>, vector<256x128xf32> -> vector<256x128xf32>
    %cst_26 = arith.constant 1.000000e+00 : f32
    %50 = vector.broadcast %cst_26 : f32 to vector<256x128xf32>
    %51 = arith.cmpf ogt, %49, %50 : vector<256x128xf32>
    %52 = arith.extui %51 : vector<256x128xi1> to vector<256x128xi32>
    %53 = arith.sitofp %52 : vector<256x128xi32> to vector<256x128xf32>
    %cst_27 = arith.constant 1.000000e+00 : f32
    %54 = vector.broadcast %cst_27 : f32 to vector<256x128xf32>
    %55 = arith.cmpf ogt, %53, %54 : vector<256x128xf32>
    %56 = arith.extui %55 : vector<256x128xi1> to vector<256x128xi32>
    %57 = arith.sitofp %56 : vector<256x128xi32> to vector<256x128xf32>
    %58 = arith.truncf %57 : vector<256x128xf32> to vector<256x128xbf16>
    %cst_28 = arith.constant dense<0.000000e+00> : vector<64x128xf32>
    %59 = tpu.matmul %1, %58, %cst_28 {dimension_numbers = #tpu.dot_dimension_numbers<[1], [0], [0], [1], [0, 0, 1, 1], [], []>} : vector<64x256xbf16>, vector<256x128xbf16>, vector<64x128xf32> -> vector<64x128xf32>
    %cst_29 = arith.constant 1.000000e+00 : f32
    %60 = vector.broadcast %cst_29 : f32 to vector<64x128xf32>
    %61 = arith.cmpf ogt, %59, %60 : vector<64x128xf32>
    %62 = arith.extui %61 : vector<64x128xi1> to vector<64x128xi32>
    %63 = arith.sitofp %62 : vector<64x128xi32> to vector<64x128xf32>
    %64 = arith.truncf %63 : vector<64x128xf32> to vector<64x128xbf16>
    %c2_30 = arith.constant 2 : index
    %c0_31 = arith.constant 0 : index
    %c0_32 = arith.constant 0 : index
    %65 = vector.load %arg4[%c2_30, %c0_31, %c0_32] : memref<4x64x128xbf16, #tpu.memory_space<vmem>>, vector<1x64x128xbf16>
    %66 = vector.shape_cast %65 : vector<1x64x128xbf16> to vector<64x128xbf16>
    %67 = vector.shape_cast %64 : vector<64x128xbf16> to vector<1x64x128xbf16>
    tpu.vector_store %arg4[%c2_30, %c0_31, %c0_32], %67 {strides = array<i32>} : memref<4x64x128xbf16, #tpu.memory_space<vmem>>, vector<1x64x128xbf16>,
    %c3 = arith.constant 3 : index
    %c0_33 = arith.constant 0 : index
    %c0_34 = arith.constant 0 : index
    %68 = vector.load %arg1[%c3, %c0_33, %c0_34] : memref<4x64x128xf32, #tpu.memory_space<vmem>>, vector<1x64x128xf32>
    %69 = vector.shape_cast %68 : vector<1x64x128xf32> to vector<64x128xf32>
    %70 = arith.truncf %69 : vector<64x128xf32> to vector<64x128xbf16>
    %cst_35 = arith.constant dense<0.000000e+00> : vector<256x128xf32>
    %71 = tpu.matmul %0, %70, %cst_35 {dimension_numbers = #tpu.dot_dimension_numbers<[1], [0], [0], [1], [0, 0, 1, 1], [], []>} : vector<256x64xbf16>, vector<64x128xbf16>, vector<256x128xf32> -> vector<256x128xf32>
    %cst_36 = arith.constant 1.000000e+00 : f32
    %72 = vector.broadcast %cst_36 : f32 to vector<256x128xf32>
    %73 = arith.cmpf ogt, %71, %72 : vector<256x128xf32>
    %74 = arith.extui %73 : vector<256x128xi1> to vector<256x128xi32>
    %75 = arith.sitofp %74 : vector<256x128xi32> to vector<256x128xf32>
    %cst_37 = arith.constant 1.000000e+00 : f32
    %76 = vector.broadcast %cst_37 : f32 to vector<256x128xf32>
    %77 = arith.cmpf ogt, %75, %76 : vector<256x128xf32>
    %78 = arith.extui %77 : vector<256x128xi1> to vector<256x128xi32>
    %79 = arith.sitofp %78 : vector<256x128xi32> to vector<256x128xf32>
    %80 = arith.truncf %79 : vector<256x128xf32> to vector<256x128xbf16>
    %cst_38 = arith.constant dense<0.000000e+00> : vector<64x128xf32>
    %81 = tpu.matmul %1, %80, %cst_38 {dimension_numbers = #tpu.dot_dimension_numbers<[1], [0], [0], [1], [0, 0, 1, 1], [], []>} : vector<64x256xbf16>, vector<256x128xbf16>, vector<64x128xf32> -> vector<64x128xf32>
    %cst_39 = arith.constant 1.000000e+00 : f32
    %82 = vector.broadcast %cst_39 : f32 to vector<64x128xf32>
    %83 = arith.cmpf ogt, %81, %82 : vector<64x128xf32>
    %84 = arith.extui %83 : vector<64x128xi1> to vector<64x128xi32>
    %85 = arith.sitofp %84 : vector<64x128xi32> to vector<64x128xf32>
    %86 = arith.truncf %85 : vector<64x128xf32> to vector<64x128xbf16>
    %c3_40 = arith.constant 3 : index
    %c0_41 = arith.constant 0 : index
    %c0_42 = arith.constant 0 : index
    %87 = vector.load %arg4[%c3_40, %c0_41, %c0_42] : memref<4x64x128xbf16, #tpu.memory_space<vmem>>, vector<1x64x128xbf16>
    %88 = vector.shape_cast %87 : vector<1x64x128xbf16> to vector<64x128xbf16>
    %89 = vector.shape_cast %86 : vector<64x128xbf16> to vector<1x64x128xbf16>
    tpu.vector_store %arg4[%c3_40, %c0_41, %c0_42], %89 {strides = array<i32>} : memref<4x64x128xbf16, #tpu.memory_space<vmem>>, vector<1x64x128xbf16>,
    return
  }
  func.func @transform_0(%arg0: i32) -> (i32, i32, i32) {
    %c0_i32 = arith.constant 0 : i32
    %c0_i32_0 = arith.constant 0 : i32
    %c0_i32_1 = arith.constant 0 : i32
    return %arg0, %c0_i32, %c0_i32_0 : i32, i32, i32
  }
  func.func @transform_1(%arg0: i32) -> (i32, i32) {
    %c0_i32 = arith.constant 0 : i32
    %c0_i32_0 = arith.constant 0 : i32
    %c0_i32_1 = arith.constant 0 : i32
    return %c0_i32, %c0_i32_0 : i32, i32
  }
  func.func @transform_2(%arg0: i32) -> (i32, i32) {
    %c0_i32 = arith.constant 0 : i32
    %c0_i32_0 = arith.constant 0 : i32
    %c0_i32_1 = arith.constant 0 : i32
    return %c0_i32, %c0_i32_0 : i32, i32
  }
  func.func @transform_3(%arg0: i32) -> (i32, i32, i32) {
    %c0_i32 = arith.constant 0 : i32
    %c0_i32_0 = arith.constant 0 : i32
    %c0_i32_1 = arith.constant 0 : i32
    return %arg0, %c0_i32, %c0_i32_0 : i32, i32, i32
  }
}

</mosaic_0001>

<llo_original>
// kernel: tpu_custom_call.1
$region0: #{tpu_custom_call.1}
  #allocation0 [shape = 'u32[]', space=smem, size = 0x4, offset = 0x4, fixed_abs, tag = 'smem constant byte address 0x4 - core index']
  #allocation1 [shape = 'u32[144,128]{1,0:T(1,128)}', space=vmem, size = 0x12000, scoped, tag = 'internal scratch']
  %s0 = inlined_call_operand.hbm [shape: f32[8,64,128], index: 0, kind: input, shape index: {}]
  %s1 = inlined_call_operand.vmem [shape: bf16[256,64], index: 1, kind: input, shape index: {}]
  %s2 = inlined_call_operand.vmem [shape: bf16[64,256], index: 2, kind: input, shape index: {}]
  %s3 = inlined_call_operand.hbm [shape: bf16[8,64,128], index: 3, kind: output, shape index: {}]
  %s4 = sld [smem:[#allocation0]]
  $region49: #{tpu_custom_call.1} parent=0
    _
  %s6 = ssub.s32 1, %s4
  %s7 = scalar_select 0, %s6, %s4
  $region1: #{tpu_custom_call.1} parent=0
    #allocation2 [shape = 'u8[262144]{0}', space=vmem, size = 0x40000, scoped, tag = 'input window, operand 0']
    #allocation3 [shape = 's32[2]{0}', space=sflag, size = 0x8, scoped, tag = 'scoped memory for tpu_custom_call.1']
    #allocation4 [shape = 's32[2]{0}', space=sflag, size = 0x8, scoped, tag = 'scoped memory for tpu_custom_call.1']
    #allocation5 [shape = 'u8[131072]{0}', space=vmem, size = 0x20000, scoped, tag = 'output window, operand 0']
    %8 = vsyncpa [#allocation3], 0
    %s9 = scalar_lea.sflag [#allocation3], 1
    %10 = vsyncpa %s9, 0
    %11 = vsyncpa [#allocation4], 0
    %s12 = scalar_lea.sflag [#allocation4], 1
    %13 = vsyncpa %s12, 0
    loop: start=0, step=1, limit=4
    $region2: #{tpu_custom_call.1} parent=1 // loop_pre_header
      _
    $region3: #{tpu_custom_call.1} parent=1 // loop_header
      %s15 = sphi 0, %s19
      %p16 = scmp.ge.s32.totalorder %s15, 4
      %s25 = sphi 0, %s27
      %s28 = sphi 0, %s25
      %s29 = sphi 0, %s28
      %s45 = sphi 0, %s29
      %s49 = sphi 0, %s49
      %s51 = sphi 0, %s49
      %s52 = sphi 0, %s51
      %s66 = sphi 0, %s52
      %s70 = sphi 0, %s70
      %s72 = sphi 0, %s70
      %s73 = sphi 0, %s72
      %s87 = sphi 0, %s73
      %s93 = sphi 0, %s95
      %s96 = sphi 0, %s93
      %s97 = sphi 0, %s96
      %s113 = sphi 0, %s97
    $region4: #{tpu_custom_call.1} parent=1 // loop_header_branch
      %18 = sbr.rel (%p16) target = $region8
    $region5: #{tpu_custom_call.1} parent=1 // loop_body
      %s20 = ssub.s32 %s15, 1
      %s21 = ssub.s32 %s15, 2
      %s22 = sadd.s32 %s15, 1
      %s23 = ssub.s32 %s15, %s22
      %p24 = scmp.eq.s32.totalorder %s23, 0
      %s26 = sadd.s32 %s25, 1
      %s27 = scalar_select %p24, %s25, %s26
      %p30 = pneg %p24
      %p31 = scmp.eq.s32.totalorder %s15, 1
      %p32 = por %p30, %p31
      %p33 = scmp.ne.s32.totalorder %s25, %s28
      %p34 = scmp.eq.s32.totalorder %s15, 0
      %p35 = por %p33, %p34
      %p36 = scmp.ne.s32.totalorder %s25, %s28
      %p37 = scmp.eq.s32.totalorder %s20, 1
      %p38 = por %p36, %p37
      %p39 = scmp.ne.s32.totalorder %s28, %s29
      %p40 = scmp.eq.s32.totalorder %s20, 0
      %p41 = por %p39, %p40
      %p42 = scmp.ne.s32.totalorder %s28, %s29
      %p43 = scmp.eq.s32.totalorder %s21, 1
      %p44 = por %p42, %p43
      %p46 = scmp.ne.s32.totalorder %s29, %s45
      %p47 = scmp.eq.s32.totalorder %s21, 0
      %p48 = por %p46, %p47
      %s50 = sadd.s32 %s49, 1
      %p53 = scmp.eq.s32.totalorder %s15, 1
      %p54 = scmp.ne.s32.totalorder %s49, %s51
      %p55 = scmp.eq.s32.totalorder %s15, 0
      %p56 = por %p54, %p55
      %p57 = scmp.ne.s32.totalorder %s49, %s51
      %p58 = scmp.eq.s32.totalorder %s20, 1
      %p59 = por %p57, %p58
      %p60 = scmp.ne.s32.totalorder %s51, %s52
      %p61 = scmp.eq.s32.totalorder %s20, 0
      %p62 = por %p60, %p61
      %p63 = scmp.ne.s32.totalorder %s51, %s52
      %p64 = scmp.eq.s32.totalorder %s21, 1
      %p65 = por %p63, %p64
      %p67 = scmp.ne.s32.totalorder %s52, %s66
      %p68 = scmp.eq.s32.totalorder %s21, 0
      %p69 = por %p67, %p68
      %s71 = sadd.s32 %s70, 1
      %p74 = scmp.eq.s32.totalorder %s15, 1
      %p75 = scmp.ne.s32.totalorder %s70, %s72
      %p76 = scmp.eq.s32.totalorder %s15, 0
      %p77 = por %p75, %p76
      %p78 = scmp.ne.s32.totalorder %s70, %s72
      %p79 = scmp.eq.s32.totalorder %s20, 1
      %p80 = por %p78, %p79
      %p81 = scmp.ne.s32.totalorder %s72, %s73
      %p82 = scmp.eq.s32.totalorder %s20, 0
      %p83 = por %p81, %p82
      %p84 = scmp.ne.s32.totalorder %s72, %s73
      %p85 = scmp.eq.s32.totalorder %s21, 1
      %p86 = por %p84, %p85
      %p88 = scmp.ne.s32.totalorder %s73, %s87
      %p89 = scmp.eq.s32.totalorder %s21, 0
      %p90 = por %p88, %p89
      %s91 = ssub.s32 %s15, %s22
      %p92 = scmp.eq.s32.totalorder %s91, 0
      %s94 = sadd.s32 %s93, 1
      %s95 = scalar_select %p92, %s93, %s94
      %p98 = pneg %p92
      %p99 = scmp.eq.s32.totalorder %s15, 1
      %p100 = por %p98, %p99
      %p101 = scmp.ne.s32.totalorder %s93, %s96
      %p102 = scmp.eq.s32.totalorder %s15, 0
      %p103 = por %p101, %p102
      %p104 = scmp.ne.s32.totalorder %s93, %s96
      %p105 = scmp.eq.s32.totalorder %s20, 1
      %p106 = por %p104, %p105
      %p107 = scmp.ne.s32.totalorder %s96, %s97
      %p108 = scmp.eq.s32.totalorder %s20, 0
      %p109 = por %p107, %p108
      %p110 = scmp.ne.s32.totalorder %s96, %s97
      %p111 = scmp.eq.s32.totalorder %s21, 1
      %p112 = por %p110, %p111
      %p114 = scmp.ne.s32.totalorder %s97, %s113
      %p115 = scmp.eq.s32.totalorder %s21, 0
      %p116 = por %p114, %p115
      %p117 = scmp.le.s32.totalorder 1, %s15
      %p118 = scmp.lt.s32.totalorder %s15, 3
      %p119 = pnand %p117, %p118
      %p120 = pneg %p119
      // Predicated region
      $region9: #{tpu_custom_call.1} parent=5 // pred_check
        _
      $region10: #{tpu_custom_call.1} parent=5 // pred_check_branch
        %122 = sbr.rel (%p119) target = $region12
      $region11: #{tpu_custom_call.1} parent=5 // pred_region
        %s123 = ssub.s32 %s15, 1
        // Predicated region
        $region13: #{tpu_custom_call.1} parent=11 // pred_check
          %p124 = pneg %p62
        $region14: #{tpu_custom_call.1} parent=11 // pred_check_branch
          %126 = sbr.rel (%p124) target = $region16
        $region15: #{tpu_custom_call.1} parent=11 // pred_region
          _
        $region16: #{tpu_custom_call.1} parent=11 // pred_fallthru
          _
        // Predicated region
        $region17: #{tpu_custom_call.1} parent=11 // pred_check
          %p127 = pneg %p83
        $region18: #{tpu_custom_call.1} parent=11 // pred_check_branch
          %129 = sbr.rel (%p127) target = $region20
        $region19: #{tpu_custom_call.1} parent=11 // pred_region
          _
        $region20: #{tpu_custom_call.1} parent=11 // pred_fallthru
          _
      $region12: #{tpu_custom_call.1} parent=5 // pred_fallthru
        _
      %p130 = scmp.lt.s32.totalorder %s15, 2
      // Predicated region
      $region21: #{tpu_custom_call.1} parent=5 // pred_check
        %p131 = pneg %p130
      $region22: #{tpu_custom_call.1} parent=5 // pred_check_branch
        %133 = sbr.rel (%p131) target = $region24
      $region23: #{tpu_custom_call.1} parent=5 // pred_region
        // Predicated region
        $region25: #{tpu_custom_call.1} parent=23 // pred_check
          %p134 = pneg %p35
        $region26: #{tpu_custom_call.1} parent=23 // pred_check_branch
          %136 = sbr.rel (%p134) target = $region28
        $region27: #{tpu_custom_call.1} parent=23 // pred_region
          %s137 = sand.u32 %s25, 1
          %s138 = scalar_lea.sflag [#allocation3], %s137
          %s139 = sand.u32 %s25, 1
          %s140 = smul.addr %s139, 256
          %s141 = scalar_lea.vmem [#allocation2], %s140
          %s142 = smul.u32 4, %s15
          %s144 = ssub.s32 4096, 4096
          %145 = vsyncadd %s138, %s144
          %s146 = smul.addr %s142, 8
          %s147 = smul.addr %s146, 128
          %s148 = scalar_lea.hbm %s0, %s147
          %s149 = sshll.u32 %s141, 4
          %s150 = int_to_ptr.vmem [resolvable:$true] %s149
          %155 = dma.hbm_to_vmem [thread:$0]  %s148, 4096, %s150, %s138, 128, 128, 8
        $region28: #{tpu_custom_call.1} parent=23 // pred_fallthru
          _
      $region24: #{tpu_custom_call.1} parent=5 // pred_fallthru
        _
      %p156 = scmp.le.s32.totalorder 1, %s15
      %p157 = scmp.lt.s32.totalorder %s15, 3
      %p158 = pnand %p156, %p157
      %p159 = pneg %p158
      // Predicated region
      $region29: #{tpu_custom_call.1} parent=5 // pred_check
        _
      $region30: #{tpu_custom_call.1} parent=5 // pred_check_branch
        %161 = sbr.rel (%p158) target = $region32
      $region31: #{tpu_custom_call.1} parent=5 // pred_region
        %s162 = ssub.s32 %s15, 1
        %s163 = sand.u32 %s28, 1
        %s164 = scalar_lea.sflag [#allocation3], %s163
        %s165 = sand.u32 %s28, 1
        %s166 = smul.addr %s165, 256
        %s167 = scalar_lea.vmem [#allocation2], %s166
        // Predicated region
        $region33: #{tpu_custom_call.1} parent=31 // pred_check
          %p168 = pneg %p41
        $region34: #{tpu_custom_call.1} parent=31 // pred_check_branch
          %170 = sbr.rel (%p168) target = $region36
        $region35: #{tpu_custom_call.1} parent=31 // pred_region
          %171 = dma.done %s164, 4096
        $region36: #{tpu_custom_call.1} parent=31 // pred_fallthru
          _
        %s172 = sand.u32 %s28, 1
        %s173 = scalar_lea.sflag [#allocation3], %s172
        %s174 = sand.u32 %s28, 1
        %s175 = smul.addr %s174, 256
        %s176 = scalar_lea.vmem [#allocation2], %s175
        %p177 = pneg %p41
        %p178 = pneg %p38
        %p179 = pneg %p62
        %p180 = pneg %p59
        %p181 = pneg %p83
        %p182 = pneg %p80
        %p183 = pneg %p109
        %p184 = pneg %p106
        %s185 = sand.u32 %s96, 1
        %s186 = scalar_lea.sflag [#allocation4], %s185
        %s187 = sand.u32 %s96, 1
        %s188 = smul.addr %s187, 128
        %s189 = scalar_lea.vmem [#allocation5], %s188
        %s190 = smul.u32 4, %s20
        %s191 = smul.u32 4, %s20
        %v193 = vld [vmem:[%s1] sm:$0xf]
        %v194 = vld [vmem:[%s1 + $0x4] sm:$0xf]
        %v195 = vld [vmem:[%s1 + $0x8] sm:$0xf]
        %v196 = vld [vmem:[%s1 + $0xc] sm:$0xf]
        %v197 = vld [vmem:[%s1 + $0x10] sm:$0xf]
        %v198 = vld [vmem:[%s1 + $0x14] sm:$0xf]
        %v199 = vld [vmem:[%s1 + $0x18] sm:$0xf]
        %v200 = vld [vmem:[%s1 + $0x1c] sm:$0xf]
        %v201 = vld [vmem:[%s1 + $0x20] sm:$0xf]
        %v202 = vld [vmem:[%s1 + $0x24] sm:$0xf]
        %v203 = vld [vmem:[%s1 + $0x28] sm:$0xf]
        %v204 = vld [vmem:[%s1 + $0x2c] sm:$0xf]
        %v205 = vld [vmem:[%s1 + $0x30] sm:$0xf]
        %v206 = vld [vmem:[%s1 + $0x34] sm:$0xf]
        %v207 = vld [vmem:[%s1 + $0x38] sm:$0xf]
        %v208 = vld [vmem:[%s1 + $0x3c] sm:$0xf]
        %v209 = vld [vmem:[%s1 + $0x40] sm:$0xf]
        %v210 = vld [vmem:[%s1 + $0x44] sm:$0xf]
        %v211 = vld [vmem:[%s1 + $0x48] sm:$0xf]
        %v212 = vld [vmem:[%s1 + $0x4c] sm:$0xf]
        %v213 = vld [vmem:[%s1 + $0x50] sm:$0xf]
        %v214 = vld [vmem:[%s1 + $0x54] sm:$0xf]
        %v215 = vld [vmem:[%s1 + $0x58] sm:$0xf]
        %v216 = vld [vmem:[%s1 + $0x5c] sm:$0xf]
        %v217 = vld [vmem:[%s1 + $0x60] sm:$0xf]
        %v218 = vld [vmem:[%s1 + $0x64] sm:$0xf]
        %v219 = vld [vmem:[%s1 + $0x68] sm:$0xf]
        %v220 = vld [vmem:[%s1 + $0x6c] sm:$0xf]
        %v221 = vld [vmem:[%s1 + $0x70] sm:$0xf]
        %v222 = vld [vmem:[%s1 + $0x74] sm:$0xf]
        %v223 = vld [vmem:[%s1 + $0x78] sm:$0xf]
        %v224 = vld [vmem:[%s1 + $0x7c] sm:$0xf]
        %v225 = vld [vmem:[%s2] sm:$0xff]
        %v226 = vld [vmem:[%s2 + $0x8] sm:$0xff]
        %v227 = vld [vmem:[%s2 + $0x10] sm:$0xff]
        %v228 = vld [vmem:[%s2 + $0x18] sm:$0xff]
        %v229 = vld [vmem:[%s2 + $0x20] sm:$0xff]
        %v230 = vld [vmem:[%s2 + $0x28] sm:$0xff]
        %v231 = vld [vmem:[%s2 + $0x30] sm:$0xff]
        %v232 = vld [vmem:[%s2 + $0x38] sm:$0xff]
        %v233 = vld [vmem:[%s167] sm:$0xff]
        %v234 = vld [vmem:[%s167 + $0x8] sm:$0xff]
        %v235 = vld [vmem:[%s167 + $0x10] sm:$0xff]
        %v236 = vld [vmem:[%s167 + $0x18] sm:$0xff]
        %v237 = vld [vmem:[%s167 + $0x20] sm:$0xff]
        %v238 = vld [vmem:[%s167 + $0x28] sm:$0xff]
        %v239 = vld [vmem:[%s167 + $0x30] sm:$0xff]
        %v240 = vld [vmem:[%s167 + $0x38] sm:$0xff]
        %v241 = vpack.c.bf16 %v234, %v233
        %v242 = vpack.c.bf16 %v236, %v235
        %v243 = vpack.c.bf16 %v238, %v237
        %v244 = vpack.c.bf16 %v240, %v239
        %v277 = vunpack.c.l.b16 %v193
        %v278 = vunpack.c.l.b16 %v194
        %v279 = vunpack.c.l.b16 %v195
        %v280 = vunpack.c.l.b16 %v196
        %v281 = vunpack.c.l.b16 %v197
        %v282 = vunpack.c.l.b16 %v198
        %v283 = vunpack.c.l.b16 %v199
        %v284 = vunpack.c.l.b16 %v200
        %v285 = vunpack.c.l.b16 %v201
        %v286 = vunpack.c.l.b16 %v202
        %v287 = vunpack.c.l.b16 %v203
        %v288 = vunpack.c.l.b16 %v204
        %v289 = vunpack.c.l.b16 %v205
        %v290 = vunpack.c.l.b16 %v206
        %v291 = vunpack.c.l.b16 %v207
        %v292 = vunpack.c.l.b16 %v208
        %v293 = vunpack.c.l.b16 %v209
        %v294 = vunpack.c.l.b16 %v210
        %v295 = vunpack.c.l.b16 %v211
        %v296 = vunpack.c.l.b16 %v212
        %v297 = vunpack.c.l.b16 %v213
        %v298 = vunpack.c.l.b16 %v214
        %v299 = vunpack.c.l.b16 %v215
        %v300 = vunpack.c.l.b16 %v216
        %v301 = vunpack.c.l.b16 %v217
        %v302 = vunpack.c.l.b16 %v218
        %v303 = vunpack.c.l.b16 %v219
        %v304 = vunpack.c.l.b16 %v220
        %v305 = vunpack.c.l.b16 %v221
        %v306 = vunpack.c.l.b16 %v222
        %v307 = vunpack.c.l.b16 %v223
        %v308 = vunpack.c.l.b16 %v224
        %v309 = vpack.c.b16 %v278, %v277
        %v310 = vpack.c.b16 %v280, %v279
        %v311 = vpack.c.b16 %v282, %v281
        %v312 = vpack.c.b16 %v284, %v283
        %v313 = vpack.c.b16 %v286, %v285
        %v314 = vpack.c.b16 %v288, %v287
        %v315 = vpack.c.b16 %v290, %v289
        %v316 = vpack.c.b16 %v292, %v291
        %v317 = vpack.c.b16 %v294, %v293
        %v318 = vpack.c.b16 %v296, %v295
        %v319 = vpack.c.b16 %v298, %v297
        %v320 = vpack.c.b16 %v300, %v299
        %v321 = vpack.c.b16 %v302, %v301
        %v322 = vpack.c.b16 %v304, %v303
        %v323 = vpack.c.b16 %v306, %v305
        %v324 = vpack.c.b16 %v308, %v307
        %vm325 = vcmask 523264
        %v327 = vsel %vm325, %v309, 0
        %v330 = vsel %vm325, %v310, 0
        %v333 = vsel %vm325, %v311, 0
        %v336 = vsel %vm325, %v312, 0
        %v339 = vsel %vm325, %v313, 0
        %v342 = vsel %vm325, %v314, 0
        %v345 = vsel %vm325, %v315, 0
        %v348 = vsel %vm325, %v316, 0
        %v351 = vsel %vm325, %v317, 0
        %v354 = vsel %vm325, %v318, 0
        %v357 = vsel %vm325, %v319, 0
        %v360 = vsel %vm325, %v320, 0
        %v363 = vsel %vm325, %v321, 0
        %v366 = vsel %vm325, %v322, 0
        %v369 = vsel %vm325, %v323, 0
        %v372 = vsel %vm325, %v324, 0
        %374 = vmatprep.subr.bf16.mxu0 0
        %375 = vmatpush1.bf16.msra.mxu0 %v241
        %376 = vmatprep.subr.bf16.mxu0 0
        %377 = vmatpush1.bf16.msra.mxu0 %v242
        %378 = vmatprep.subr.bf16.mxu0 0
        %379 = vmatpush1.bf16.msra.mxu0 %v243
        %380 = vmatprep.subr.bf16.mxu0 0
        %381 = vmatpush1.bf16.msra.mxu0 %v244
        %382 = vmatprep.subr.bf16.mxu0 0
        %383 = vmatpush1.bf16.msra.mxu0 0
        %384 = vmatprep.subr.bf16.mxu0 0
        %385 = vmatpush1.bf16.msra.mxu0 0
        %386 = vmatprep.subr.bf16.mxu0 0
        %387 = vmatpush1.bf16.msra.mxu0 0
        %388 = vmatprep.subr.bf16.mxu0 0
        %389 = vmatpush1.bf16.msra.mxu0 0
        %390 = vmatprep.subr.bf16.mxu0 0
        %391 = vmatpush1.bf16.msra.mxu0 0
        %392 = vmatprep.subr.bf16.mxu0 0
        %393 = vmatpush1.bf16.msra.mxu0 0
        %394 = vmatprep.subr.bf16.mxu0 0
        %395 = vmatpush1.bf16.msra.mxu0 0
        %396 = vmatprep.subr.bf16.mxu0 0
        %397 = vmatpush1.bf16.msra.mxu0 0
        %398 = vmatprep.subr.bf16.mxu0 0
        %399 = vmatpush1.bf16.msra.mxu0 0
        %400 = vmatprep.subr.bf16.mxu0 0
        %401 = vmatpush1.bf16.msra.mxu0 0
        %402 = vmatprep.subr.bf16.mxu0 0
        %403 = vmatpush1.bf16.msra.mxu0 0
        %404 = vmatprep.subr.bf16.mxu0 0
        %405 = vmatpush1.bf16.msra.mxu0 0
        %406 = vmatprep.mubr.bf16.mxu0 0
        %407 = vmatmul.mubr.bf16.gmra.mrb[0].mxu0 %v327
        %v408 = vpop.f32.mrb[0].mxu0
        %v409 = vadd.f32 0.0, %v408
        %v410 = vpop.f32.mrb[0].mxu0
        %v411 = vpop.f32.mrb[0].mxu0
        %v412 = vadd.f32 0.0, %v411
        %v413 = vpop.f32.mrb[0].mxu0
        %414 = vmatprep.mubr.bf16.mxu0 0
        %415 = vmatmul.mubr.bf16.gmra.mrb[0].mxu0 %v330
        %v416 = vpop.f32.mrb[0].mxu0
        %v417 = vadd.f32 0.0, %v416
        %v418 = vpop.f32.mrb[0].mxu0
        %v419 = vpop.f32.mrb[0].mxu0
        %v420 = vadd.f32 0.0, %v419
        %v421 = vpop.f32.mrb[0].mxu0
        %422 = vmatprep.mubr.bf16.mxu0 0
        %423 = vmatmul.mubr.bf16.gmra.mrb[0].mxu0 %v333
        %v424 = vpop.f32.mrb[0].mxu0
        %v425 = vadd.f32 0.0, %v424
        %v426 = vpop.f32.mrb[0].mxu0
        %v427 = vpop.f32.mrb[0].mxu0
        %v428 = vadd.f32 0.0, %v427
        %v429 = vpop.f32.mrb[0].mxu0
        %430 = vmatprep.mubr.bf16.mxu0 0
        %431 = vmatmul.mubr.bf16.gmra.mrb[0].mxu0 %v336
        %v432 = vpop.f32.mrb[0].mxu0
        %v433 = vadd.f32 0.0, %v432
        %v434 = vpop.f32.mrb[0].mxu0
        %v435 = vpop.f32.mrb[0].mxu0
        %v436 = vadd.f32 0.0, %v435
        %v437 = vpop.f32.mrb[0].mxu0
        %438 = vmatprep.mubr.bf16.mxu0 0
        %439 = vmatmul.mubr.bf16.gmra.mrb[0].mxu0 %v339
        %v440 = vpop.f32.mrb[0].mxu0
        %v441 = vadd.f32 0.0, %v440
        %v442 = vpop.f32.mrb[0].mxu0
        %v443 = vpop.f32.mrb[0].mxu0
        %v444 = vadd.f32 0.0, %v443
        %v445 = vpop.f32.mrb[0].mxu0
        %446 = vmatprep.mubr.bf16.mxu0 0
        %447 = vmatmul.mubr.bf16.gmra.mrb[0].mxu0 %v342
        %v448 = vpop.f32.mrb[0].mxu0
        %v449 = vadd.f32 0.0, %v448
        %v450 = vpop.f32.mrb[0].mxu0
        %v451 = vpop.f32.mrb[0].mxu0
        %v452 = vadd.f32 0.0, %v451
        %v453 = vpop.f32.mrb[0].mxu0
        %454 = vmatprep.mubr.bf16.mxu0 0
        %455 = vmatmul.mubr.bf16.gmra.mrb[0].mxu0 %v345
        %v456 = vpop.f32.mrb[0].mxu0
        %v457 = vadd.f32 0.0, %v456
        %v458 = vpop.f32.mrb[0].mxu0
        %v459 = vpop.f32.mrb[0].mxu0
        %v460 = vadd.f32 0.0, %v459
        %v461 = vpop.f32.mrb[0].mxu0
        %462 = vmatprep.mubr.bf16.mxu0 0
        %463 = vmatmul.mubr.bf16.gmra.mrb[0].mxu0 %v348
        %v464 = vpop.f32.mrb[0].mxu0
        %v465 = vadd.f32 0.0, %v464
        %v466 = vpop.f32.mrb[0].mxu0
        %v467 = vpop.f32.mrb[0].mxu0
        %v468 = vadd.f32 0.0, %v467
        %v469 = vpop.f32.mrb[0].mxu0
        %470 = vmatprep.mubr.bf16.mxu0 0
        %471 = vmatmul.mubr.bf16.gmra.mrb[0].mxu0 %v351
        %v472 = vpop.f32.mrb[0].mxu0
        %v473 = vadd.f32 0.0, %v472
        %v474 = vpop.f32.mrb[0].mxu0
        %v475 = vpop.f32.mrb[0].mxu0
        %v476 = vadd.f32 0.0, %v475
        %v477 = vpop.f32.mrb[0].mxu0
        %478 = vmatprep.mubr.bf16.mxu0 0
        %479 = vmatmul.mubr.bf16.gmra.mrb[0].mxu0 %v354
        %v480 = vpop.f32.mrb[0].mxu0
        %v481 = vadd.f32 0.0, %v480
        %v482 = vpop.f32.mrb[0].mxu0
        %v483 = vpop.f32.mrb[0].mxu0
        %v484 = vadd.f32 0.0, %v483
        %v485 = vpop.f32.mrb[0].mxu0
        %486 = vmatprep.mubr.bf16.mxu0 0
        %487 = vmatmul.mubr.bf16.gmra.mrb[0].mxu0 %v357
        %v488 = vpop.f32.mrb[0].mxu0
        %v489 = vadd.f32 0.0, %v488
        %v490 = vpop.f32.mrb[0].mxu0
        %v491 = vpop.f32.mrb[0].mxu0
        %v492 = vadd.f32 0.0, %v491
        %v493 = vpop.f32.mrb[0].mxu0
        %494 = vmatprep.mubr.bf16.mxu0 0
        %495 = vmatmul.mubr.bf16.gmra.mrb[0].mxu0 %v360
        %v496 = vpop.f32.mrb[0].mxu0
        %v497 = vadd.f32 0.0, %v496
        %v498 = vpop.f32.mrb[0].mxu0
        %v499 = vpop.f32.mrb[0].mxu0
        %v500 = vadd.f32 0.0, %v499
        %v501 = vpop.f32.mrb[0].mxu0
        %502 = vmatprep.mubr.bf16.mxu0 0
        %503 = vmatmul.mubr.bf16.gmra.mrb[0].mxu0 %v363
        %v504 = vpop.f32.mrb[0].mxu0
        %v505 = vadd.f32 0.0, %v504
        %v506 = vpop.f32.mrb[0].mxu0
        %v507 = vpop.f32.mrb[0].mxu0
        %v508 = vadd.f32 0.0, %v507
        %v509 = vpop.f32.mrb[0].mxu0
        %510 = vmatprep.mubr.bf16.mxu0 0
        %511 = vmatmul.mubr.bf16.gmra.mrb[0].mxu0 %v366
        %v512 = vpop.f32.mrb[0].mxu0
        %v513 = vadd.f32 0.0, %v512
        %v514 = vpop.f32.mrb[0].mxu0
        %v515 = vpop.f32.mrb[0].mxu0
        %v516 = vadd.f32 0.0, %v515
        %v517 = vpop.f32.mrb[0].mxu0
        %518 = vmatprep.mubr.bf16.mxu0 0
        %519 = vmatmul.mubr.bf16.gmra.mrb[0].mxu0 %v369
        %v520 = vpop.f32.mrb[0].mxu0
        %v521 = vadd.f32 0.0, %v520
        %v522 = vpop.f32.mrb[0].mxu0
        %v523 = vpop.f32.mrb[0].mxu0
        %v524 = vadd.f32 0.0, %v523
        %v525 = vpop.f32.mrb[0].mxu0
        %526 = vmatprep.mubr.bf16.mxu0 0
        %527 = vmatmul.mubr.bf16.gmra.mrb[0].mxu0 %v372
        %v528 = vpop.f32.mrb[0].mxu0
        %v529 = vadd.f32 0.0, %v528
        %v530 = vpop.f32.mrb[0].mxu0
        %v531 = vpop.f32.mrb[0].mxu0
        %v532 = vadd.f32 0.0, %v531
        %v533 = vpop.f32.mrb[0].mxu0
        %534 = vdwg.mxu0
        %vm535 = vcmp.gt.f32.partialorder %v409, 1.0
        %vm536 = vcmp.gt.f32.partialorder %v412, 1.0
        %vm537 = vcmp.gt.f32.partialorder %v417, 1.0
        %vm538 = vcmp.gt.f32.partialorder %v420, 1.0
        %vm539 = vcmp.gt.f32.partialorder %v425, 1.0
        %vm540 = vcmp.gt.f32.partialorder %v428, 1.0
        %vm541 = vcmp.gt.f32.partialorder %v433, 1.0
        %vm542 = vcmp.gt.f32.partialorder %v436, 1.0
        %vm543 = vcmp.gt.f32.partialorder %v441, 1.0
        %vm544 = vcmp.gt.f32.partialorder %v444, 1.0
        %vm545 = vcmp.gt.f32.partialorder %v449, 1.0
        %vm546 = vcmp.gt.f32.partialorder %v452, 1.0
        %vm547 = vcmp.gt.f32.partialorder %v457, 1.0
        %vm548 = vcmp.gt.f32.partialorder %v460, 1.0
        %vm549 = vcmp.gt.f32.partialorder %v465, 1.0
        %vm550 = vcmp.gt.f32.partialorder %v468, 1.0
        %vm551 = vcmp.gt.f32.partialorder %v473, 1.0
        %vm552 = vcmp.gt.f32.partialorder %v476, 1.0
        %vm553 = vcmp.gt.f32.partialorder %v481, 1.0
        %vm554 = vcmp.gt.f32.partialorder %v484, 1.0
        %vm555 = vcmp.gt.f32.partialorder %v489, 1.0
        %vm556 = vcmp.gt.f32.partialorder %v492, 1.0
        %vm557 = vcmp.gt.f32.partialorder %v497, 1.0
        %vm558 = vcmp.gt.f32.partialorder %v500, 1.0
        %vm559 = vcmp.gt.f32.partialorder %v505, 1.0
        %vm560 = vcmp.gt.f32.partialorder %v508, 1.0
        %vm561 = vcmp.gt.f32.partialorder %v513, 1.0
        %vm562 = vcmp.gt.f32.partialorder %v516, 1.0
        %vm563 = vcmp.gt.f32.partialorder %v521, 1.0
        %vm564 = vcmp.gt.f32.partialorder %v524, 1.0
        %vm565 = vcmp.gt.f32.partialorder %v529, 1.0
        %vm566 = vcmp.gt.f32.partialorder %v532, 1.0
        %v567 = vsel %vm535, 1, 0
        %v568 = vsel %vm536, 1, 0
        %v569 = vsel %vm537, 1, 0
        %v570 = vsel %vm538, 1, 0
        %v571 = vsel %vm539, 1, 0
        %v572 = vsel %vm540, 1, 0
        %v573 = vsel %vm541, 1, 0
        %v574 = vsel %vm542, 1, 0
        %v575 = vsel %vm543, 1, 0
        %v576 = vsel %vm544, 1, 0
        %v577 = vsel %vm545, 1, 0
        %v578 = vsel %vm546, 1, 0
        %v579 = vsel %vm547, 1, 0
        %v580 = vsel %vm548, 1, 0
        %v581 = vsel %vm549, 1, 0
        %v582 = vsel %vm550, 1, 0
        %v583 = vsel %vm551, 1, 0
        %v584 = vsel %vm552, 1, 0
        %v585 = vsel %vm553, 1, 0
        %v586 = vsel %vm554, 1, 0
        %v587 = vsel %vm555, 1, 0
        %v588 = vsel %vm556, 1, 0
        %v589 = vsel %vm557, 1, 0
        %v590 = vsel %vm558, 1, 0
        %v591 = vsel %vm559, 1, 0
        %v592 = vsel %vm560, 1, 0
        %v593 = vsel %vm561, 1, 0
        %v594 = vsel %vm562, 1, 0
        %v595 = vsel %vm563, 1, 0
        %v596 = vsel %vm564, 1, 0
        %v597 = vsel %vm565, 1, 0
        %v598 = vsel %vm566, 1, 0
        %v599 = vcvt.s32.f32 %v567
        %v600 = vcvt.s32.f32 %v568
        %v601 = vcvt.s32.f32 %v569
        %v602 = vcvt.s32.f32 %v570
        %v603 = vcvt.s32.f32 %v571
        %v604 = vcvt.s32.f32 %v572
        %v605 = vcvt.s32.f32 %v573
        %v606 = vcvt.s32.f32 %v574
        %v607 = vcvt.s32.f32 %v575
        %v608 = vcvt.s32.f32 %v576
        %v609 = vcvt.s32.f32 %v577
        %v610 = vcvt.s32.f32 %v578
        %v611 = vcvt.s32.f32 %v579
        %v612 = vcvt.s32.f32 %v580
        %v613 = vcvt.s32.f32 %v581
        %v614 = vcvt.s32.f32 %v582
        %v615 = vcvt.s32.f32 %v583
        %v616 = vcvt.s32.f32 %v584
        %v617 = vcvt.s32.f32 %v585
        %v618 = vcvt.s32.f32 %v586
        %v619 = vcvt.s32.f32 %v587
        %v620 = vcvt.s32.f32 %v588
        %v621 = vcvt.s32.f32 %v589
        %v622 = vcvt.s32.f32 %v590
        %v623 = vcvt.s32.f32 %v591
        %v624 = vcvt.s32.f32 %v592
        %v625 = vcvt.s32.f32 %v593
        %v626 = vcvt.s32.f32 %v594
        %v627 = vcvt.s32.f32 %v595
        %v628 = vcvt.s32.f32 %v596
        %v629 = vcvt.s32.f32 %v597
        %v630 = vcvt.s32.f32 %v598
        %vm631 = vcmp.gt.f32.partialorder %v599, 1.0
        %vm632 = vcmp.gt.f32.partialorder %v600, 1.0
        %vm633 = vcmp.gt.f32.partialorder %v601, 1.0
        %vm634 = vcmp.gt.f32.partialorder %v602, 1.0
        %vm635 = vcmp.gt.f32.partialorder %v603, 1.0
        %vm636 = vcmp.gt.f32.partialorder %v604, 1.0
        %vm637 = vcmp.gt.f32.partialorder %v605, 1.0
        %vm638 = vcmp.gt.f32.partialorder %v606, 1.0
        %vm639 = vcmp.gt.f32.partialorder %v607, 1.0
        %vm640 = vcmp.gt.f32.partialorder %v608, 1.0
        %vm641 = vcmp.gt.f32.partialorder %v609, 1.0
        %vm642 = vcmp.gt.f32.partialorder %v610, 1.0
        %vm643 = vcmp.gt.f32.partialorder %v611, 1.0
        %vm644 = vcmp.gt.f32.partialorder %v612, 1.0
        %vm645 = vcmp.gt.f32.partialorder %v613, 1.0
        %vm646 = vcmp.gt.f32.partialorder %v614, 1.0
        %vm647 = vcmp.gt.f32.partialorder %v615, 1.0
        %vm648 = vcmp.gt.f32.partialorder %v616, 1.0
        %vm649 = vcmp.gt.f32.partialorder %v617, 1.0
        %vm650 = vcmp.gt.f32.partialorder %v618, 1.0
        %vm651 = vcmp.gt.f32.partialorder %v619, 1.0
        %vm652 = vcmp.gt.f32.partialorder %v620, 1.0
        %vm653 = vcmp.gt.f32.partialorder %v621, 1.0
        %vm654 = vcmp.gt.f32.partialorder %v622, 1.0
        %vm655 = vcmp.gt.f32.partialorder %v623, 1.0
        %vm656 = vcmp.gt.f32.partialorder %v624, 1.0
        %vm657 = vcmp.gt.f32.partialorder %v625, 1.0
        %vm658 = vcmp.gt.f32.partialorder %v626, 1.0
        %vm659 = vcmp.gt.f32.partialorder %v627, 1.0
        %vm660 = vcmp.gt.f32.partialorder %v628, 1.0
        %vm661 = vcmp.gt.f32.partialorder %v629, 1.0
        %vm662 = vcmp.gt.f32.partialorder %v630, 1.0
        %v663 = vsel %vm631, 1, 0
        %v664 = vsel %vm632, 1, 0
        %v665 = vsel %vm633, 1, 0
        %v666 = vsel %vm634, 1, 0
        %v667 = vsel %vm635, 1, 0
        %v668 = vsel %vm636, 1, 0
        %v669 = vsel %vm637, 1, 0
        %v670 = vsel %vm638, 1, 0
        %v671 = vsel %vm639, 1, 0
        %v672 = vsel %vm640, 1, 0
        %v673 = vsel %vm641, 1, 0
        %v674 = vsel %vm642, 1, 0
        %v675 = vsel %vm643, 1, 0
        %v676 = vsel %vm644, 1, 0
        %v677 = vsel %vm645, 1, 0
        %v678 = vsel %vm646, 1, 0
        %v679 = vsel %vm647, 1, 0
        %v680 = vsel %vm648, 1, 0
        %v681 = vsel %vm649, 1, 0
        %v682 = vsel %vm650, 1, 0
        %v683 = vsel %vm651, 1, 0
        %v684 = vsel %vm652, 1, 0
        %v685 = vsel %vm653, 1, 0
        %v686 = vsel %vm654, 1, 0
        %v687 = vsel %vm655, 1, 0
        %v688 = vsel %vm656, 1, 0
        %v689 = vsel %vm657, 1, 0
        %v690 = vsel %vm658, 1, 0
        %v691 = vsel %vm659, 1, 0
        %v692 = vsel %vm660, 1, 0
        %v693 = vsel %vm661, 1, 0
        %v694 = vsel %vm662, 1, 0
        %v695 = vcvt.s32.f32 %v663
        %v696 = vcvt.s32.f32 %v664
        %v697 = vcvt.s32.f32 %v665
        %v698 = vcvt.s32.f32 %v666
        %v699 = vcvt.s32.f32 %v667
        %v700 = vcvt.s32.f32 %v668
        %v701 = vcvt.s32.f32 %v669
        %v702 = vcvt.s32.f32 %v670
        %v703 = vcvt.s32.f32 %v671
        %v704 = vcvt.s32.f32 %v672
        %v705 = vcvt.s32.f32 %v673
        %v706 = vcvt.s32.f32 %v674
        %v707 = vcvt.s32.f32 %v675
        %v708 = vcvt.s32.f32 %v676
        %v709 = vcvt.s32.f32 %v677
        %v710 = vcvt.s32.f32 %v678
        %v711 = vcvt.s32.f32 %v679
        %v712 = vcvt.s32.f32 %v680
        %v713 = vcvt.s32.f32 %v681
        %v714 = vcvt.s32.f32 %v682
        %v715 = vcvt.s32.f32 %v683
        %v716 = vcvt.s32.f32 %v684
        %v717 = vcvt.s32.f32 %v685
        %v718 = vcvt.s32.f32 %v686
        %v719 = vcvt.s32.f32 %v687
        %v720 = vcvt.s32.f32 %v688
        %v721 = vcvt.s32.f32 %v689
        %v722 = vcvt.s32.f32 %v690
        %v723 = vcvt.s32.f32 %v691
        %v724 = vcvt.s32.f32 %v692
        %v725 = vcvt.s32.f32 %v693
        %v726 = vcvt.s32.f32 %v694
        %v727 = vpack.c.bf16 %v696, %v695
        %v728 = vpack.c.bf16 %v698, %v697
        %v729 = vpack.c.bf16 %v700, %v699
        %v730 = vpack.c.bf16 %v702, %v701
        %v731 = vpack.c.bf16 %v704, %v703
        %v732 = vpack.c.bf16 %v706, %v705
        %v733 = vpack.c.bf16 %v708, %v707
        %v734 = vpack.c.bf16 %v710, %v709
        %v735 = vpack.c.bf16 %v712, %v711
        %v736 = vpack.c.bf16 %v714, %v713
        %v737 = vpack.c.bf16 %v716, %v715
        %v738 = vpack.c.bf16 %v718, %v717
        %v739 = vpack.c.bf16 %v720, %v719
        %v740 = vpack.c.bf16 %v722, %v721
        %v741 = vpack.c.bf16 %v724, %v723
        %v742 = vpack.c.bf16 %v726, %v725
        %v751 = vunpack.c.l.b16 %v225
        %v752 = vunpack.c.h.b16 %v225
        %v753 = vunpack.c.l.b16 %v226
        %v754 = vunpack.c.h.b16 %v226
        %v755 = vunpack.c.l.b16 %v227
        %v756 = vunpack.c.h.b16 %v227
        %v757 = vunpack.c.l.b16 %v228
        %v758 = vunpack.c.h.b16 %v228
        %v759 = vunpack.c.l.b16 %v229
        %v760 = vunpack.c.h.b16 %v229
        %v761 = vunpack.c.l.b16 %v230
        %v762 = vunpack.c.h.b16 %v230
        %v763 = vunpack.c.l.b16 %v231
        %v764 = vunpack.c.h.b16 %v231
        %v765 = vunpack.c.l.b16 %v232
        %v766 = vunpack.c.h.b16 %v232
        %v767 = vpack.c.b16 %v753, %v751
        %v768 = vpack.c.b16 %v754, %v752
        %v769 = vpack.c.b16 %v757, %v755
        %v770 = vpack.c.b16 %v758, %v756
        %v771 = vpack.c.b16 %v761, %v759
        %v772 = vpack.c.b16 %v762, %v760
        %v773 = vpack.c.b16 %v765, %v763
        %v774 = vpack.c.b16 %v766, %v764
        %783 = vmatprep.subr.bf16.mxu0 0
        %784 = vmatpush1.bf16.msra.mxu0 %v727
        %785 = vmatprep.subr.bf16.mxu0 0
        %786 = vmatpush1.bf16.msra.mxu0 %v728
        %787 = vmatprep.subr.bf16.mxu0 0
        %788 = vmatpush1.bf16.msra.mxu0 %v729
        %789 = vmatprep.subr.bf16.mxu0 0
        %790 = vmatpush1.bf16.msra.mxu0 %v730
        %791 = vmatprep.subr.bf16.mxu0 0
        %792 = vmatpush1.bf16.msra.mxu0 %v731
        %793 = vmatprep.subr.bf16.mxu0 0
        %794 = vmatpush1.bf16.msra.mxu0 %v732
        %795 = vmatprep.subr.bf16.mxu0 0
        %796 = vmatpush1.bf16.msra.mxu0 %v733
        %797 = vmatprep.subr.bf16.mxu0 0
        %798 = vmatpush1.bf16.msra.mxu0 %v734
        %799 = vmatprep.subr.bf16.mxu0 0
        %800 = vmatpush1.bf16.msra.mxu0 %v735
        %801 = vmatprep.subr.bf16.mxu0 0
        %802 = vmatpush1.bf16.msra.mxu0 %v736
        %803 = vmatprep.subr.bf16.mxu0 0
        %804 = vmatpush1.bf16.msra.mxu0 %v737
        %805 = vmatprep.subr.bf16.mxu0 0
        %806 = vmatpush1.bf16.msra.mxu0 %v738
        %807 = vmatprep.subr.bf16.mxu0 0
        %808 = vmatpush1.bf16.msra.mxu0 %v739
        %809 = vmatprep.subr.bf16.mxu0 0
        %810 = vmatpush1.bf16.msra.mxu0 %v740
        %811 = vmatprep.subr.bf16.mxu0 0
        %812 = vmatpush1.bf16.msra.mxu0 %v741
        %813 = vmatprep.subr.bf16.mxu0 0
        %814 = vmatpush1.bf16.msra.mxu0 %v742
        %815 = vmatprep.mubr.bf16.mxu0 %v768
        %816 = vmatmul.mubr.bf16.gmra.mrb[0].mxu0 %v767
        %v817 = vpop.f32.mrb[0].mxu0
        %v818 = vadd.f32 0.0, %v817
        %v819 = vpop.f32.mrb[0].mxu0
        %v820 = vpop.f32.mrb[0].mxu0
        %v821 = vadd.f32 0.0, %v820
        %v822 = vpop.f32.mrb[0].mxu0
        %823 = vmatprep.mubr.bf16.mxu0 %v770
        %824 = vmatmul.mubr.bf16.gmra.mrb[0].mxu0 %v769
        %v825 = vpop.f32.mrb[0].mxu0
        %v826 = vadd.f32 0.0, %v825
        %v827 = vpop.f32.mrb[0].mxu0
        %v828 = vpop.f32.mrb[0].mxu0
        %v829 = vadd.f32 0.0, %v828
        %v830 = vpop.f32.mrb[0].mxu0
        %831 = vmatprep.mubr.bf16.mxu0 %v772
        %832 = vmatmul.mubr.bf16.gmra.mrb[0].mxu0 %v771
        %v833 = vpop.f32.mrb[0].mxu0
        %v834 = vadd.f32 0.0, %v833
        %v835 = vpop.f32.mrb[0].mxu0
        %v836 = vpop.f32.mrb[0].mxu0
        %v837 = vadd.f32 0.0, %v836
        %v838 = vpop.f32.mrb[0].mxu0
        %839 = vmatprep.mubr.bf16.mxu0 %v774
        %840 = vmatmul.mubr.bf16.gmra.mrb[0].mxu0 %v773
        %v841 = vpop.f32.mrb[0].mxu0
        %v842 = vadd.f32 0.0, %v841
        %v843 = vpop.f32.mrb[0].mxu0
        %v844 = vpop.f32.mrb[0].mxu0
        %v845 = vadd.f32 0.0, %v844
        %v846 = vpop.f32.mrb[0].mxu0
        %847 = vdwg.mxu0
        %vm848 = vcmp.gt.f32.partialorder %v818, 1.0
        %vm849 = vcmp.gt.f32.partialorder %v821, 1.0
        %vm850 = vcmp.gt.f32.partialorder %v826, 1.0
        %vm851 = vcmp.gt.f32.partialorder %v829, 1.0
        %vm852 = vcmp.gt.f32.partialorder %v834, 1.0
        %vm853 = vcmp.gt.f32.partialorder %v837, 1.0
        %vm854 = vcmp.gt.f32.partialorder %v842, 1.0
        %vm855 = vcmp.gt.f32.partialorder %v845, 1.0
        %v856 = vsel %vm848, 1, 0
        %v857 = vsel %vm849, 1, 0
        %v858 = vsel %vm850, 1, 0
        %v859 = vsel %vm851, 1, 0
        %v860 = vsel %vm852, 1, 0
        %v861 = vsel %vm853, 1, 0
        %v862 = vsel %vm854, 1, 0
        %v863 = vsel %vm855, 1, 0
        %v864 = vcvt.s32.f32 %v856
        %v865 = vcvt.s32.f32 %v857
        %v866 = vcvt.s32.f32 %v858
        %v867 = vcvt.s32.f32 %v859
        %v868 = vcvt.s32.f32 %v860
        %v869 = vcvt.s32.f32 %v861
        %v870 = vcvt.s32.f32 %v862
        %v871 = vcvt.s32.f32 %v863
        %v872 = vpack.c.bf16 %v865, %v864
        %v873 = vpack.c.bf16 %v867, %v866
        %v874 = vpack.c.bf16 %v869, %v868
        %v875 = vpack.c.bf16 %v871, %v870
        %v880 = vunpack.c.l.b16 %v872
        %v881 = vunpack.c.h.b16 %v872
        %v882 = vunpack.c.l.b16 %v873
        %v883 = vunpack.c.h.b16 %v873
        %v884 = vunpack.c.l.b16 %v874
        %v885 = vunpack.c.h.b16 %v874
        %v886 = vunpack.c.l.b16 %v875
        %v887 = vunpack.c.h.b16 %v875
        %v888 = vpack.c.b16 %v880, %v880
        %v889 = vpack.c.b16 %v881, %v881
        %v890 = vpack.c.b16 %v882, %v882
        %v891 = vpack.c.b16 %v883, %v883
        %v892 = vpack.c.b16 %v884, %v884
        %v893 = vpack.c.b16 %v885, %v885
        %v894 = vpack.c.b16 %v886, %v886
        %v895 = vpack.c.b16 %v887, %v887
        %904 = vst [vmem:[%s189] sm:$0xf] %v888
        %905 = vst [vmem:[%s189 + $0x4] sm:$0xf] %v889
        %906 = vst [vmem:[%s189 + $0x8] sm:$0xf] %v890
        %907 = vst [vmem:[%s189 + $0xc] sm:$0xf] %v891
        %908 = vst [vmem:[%s189 + $0x10] sm:$0xf] %v892
        %909 = vst [vmem:[%s189 + $0x14] sm:$0xf] %v893
        %910 = vst [vmem:[%s189 + $0x18] sm:$0xf] %v894
        %911 = vst [vmem:[%s189 + $0x1c] sm:$0xf] %v895
        %s912 = scalar_lea.vmem %s167, 64 [#allocation2]
        %v913 = vld [vmem:[%s912] sm:$0xff]
        %v914 = vld [vmem:[%s912 + $0x8] sm:$0xff]
        %v915 = vld [vmem:[%s912 + $0x10] sm:$0xff]
        %v916 = vld [vmem:[%s912 + $0x18] sm:$0xff]
        %v917 = vld [vmem:[%s912 + $0x20] sm:$0xff]
        %v918 = vld [vmem:[%s912 + $0x28] sm:$0xff]
        %v919 = vld [vmem:[%s912 + $0x30] sm:$0xff]
        %v920 = vld [vmem:[%s912 + $0x38] sm:$0xff]
        %v921 = vpack.c.bf16 %v914, %v913
        %v922 = vpack.c.bf16 %v916, %v915
        %v923 = vpack.c.bf16 %v918, %v917
        %v924 = vpack.c.bf16 %v920, %v919
        %925 = vmatprep.subr.bf16.mxu0 0
        %926 = vmatpush1.bf16.msra.mxu0 %v921
        %927 = vmatprep.subr.bf16.mxu0 0
        %928 = vmatpush1.bf16.msra.mxu0 %v922
        %929 = vmatprep.subr.bf16.mxu0 0
        %930 = vmatpush1.bf16.msra.mxu0 %v923
        %931 = vmatprep.subr.bf16.mxu0 0
        %932 = vmatpush1.bf16.msra.mxu0 %v924
        %933 = vmatprep.subr.bf16.mxu0 0
        %934 = vmatpush1.bf16.msra.mxu0 0
        %935 = vmatprep.subr.bf16.mxu0 0
        %936 = vmatpush1.bf16.msra.mxu0 0
        %937 = vmatprep.subr.bf16.mxu0 0
        %938 = vmatpush1.bf16.msra.mxu0 0
        %939 = vmatprep.subr.bf16.mxu0 0
        %940 = vmatpush1.bf16.msra.mxu0 0
        %941 = vmatprep.subr.bf16.mxu0 0
        %942 = vmatpush1.bf16.msra.mxu0 0
        %943 = vmatprep.subr.bf16.mxu0 0
        %944 = vmatpush1.bf16.msra.mxu0 0
        %945 = vmatprep.subr.bf16.mxu0 0
        %946 = vmatpush1.bf16.msra.mxu0 0
        %947 = vmatprep.subr.bf16.mxu0 0
        %948 = vmatpush1.bf16.msra.mxu0 0
        %949 = vmatprep.subr.bf16.mxu0 0
        %950 = vmatpush1.bf16.msra.mxu0 0
        %951 = vmatprep.subr.bf16.mxu0 0
        %952 = vmatpush1.bf16.msra.mxu0 0
        %953 = vmatprep.subr.bf16.mxu0 0
        %954 = vmatpush1.bf16.msra.mxu0 0
        %955 = vmatprep.subr.bf16.mxu0 0
        %956 = vmatpush1.bf16.msra.mxu0 0
        %957 = vmatprep.mubr.bf16.mxu0 0
        %958 = vmatmul.mubr.bf16.gmra.mrb[0].mxu0 %v327
        %v959 = vpop.f32.mrb[0].mxu0
        %v960 = vadd.f32 0.0, %v959
        %v961 = vpop.f32.mrb[0].mxu0
        %v962 = vpop.f32.mrb[0].mxu0
        %v963 = vadd.f32 0.0, %v962
        %v964 = vpop.f32.mrb[0].mxu0
        %965 = vmatprep.mubr.bf16.mxu0 0
        %966 = vmatmul.mubr.bf16.gmra.mrb[0].mxu0 %v330
        %v967 = vpop.f32.mrb[0].mxu0
        %v968 = vadd.f32 0.0, %v967
        %v969 = vpop.f32.mrb[0].mxu0
        %v970 = vpop.f32.mrb[0].mxu0
        %v971 = vadd.f32 0.0, %v970
        %v972 = vpop.f32.mrb[0].mxu0
        %973 = vmatprep.mubr.bf16.mxu0 0
        %974 = vmatmul.mubr.bf16.gmra.mrb[0].mxu0 %v333
        %v975 = vpop.f32.mrb[0].mxu0
        %v976 = vadd.f32 0.0, %v975
        %v977 = vpop.f32.mrb[0].mxu0
        %v978 = vpop.f32.mrb[0].mxu0
        %v979 = vadd.f32 0.0, %v978
        %v980 = vpop.f32.mrb[0].mxu0
        %981 = vmatprep.mubr.bf16.mxu0 0
        %982 = vmatmul.mubr.bf16.gmra.mrb[0].mxu0 %v336
        %v983 = vpop.f32.mrb[0].mxu0
        %v984 = vadd.f32 0.0, %v983
        %v985 = vpop.f32.mrb[0].mxu0
        %v986 = vpop.f32.mrb[0].mxu0
        %v987 = vadd.f32 0.0, %v986
        %v988 = vpop.f32.mrb[0].mxu0
        %989 = vmatprep.mubr.bf16.mxu0 0
        %990 = vmatmul.mubr.bf16.gmra.mrb[0].mxu0 %v339
        %v991 = vpop.f32.mrb[0].mxu0
        %v992 = vadd.f32 0.0, %v991
        %v993 = vpop.f32.mrb[0].mxu0
        %v994 = vpop.f32.mrb[0].mxu0
        %v995 = vadd.f32 0.0, %v994
        %v996 = vpop.f32.mrb[0].mxu0
        %997 = vmatprep.mubr.bf16.mxu0 0
        %998 = vmatmul.mubr.bf16.gmra.mrb[0].mxu0 %v342
        %v999 = vpop.f32.mrb[0].mxu0
        %v1000 = vadd.f32 0.0, %v999
        %v1001 = vpop.f32.mrb[0].mxu0
        %v1002 = vpop.f32.mrb[0].mxu0
        %v1003 = vadd.f32 0.0, %v1002
        %v1004 = vpop.f32.mrb[0].mxu0
        %1005 = vmatprep.mubr.bf16.mxu0 0
        %1006 = vmatmul.mubr.bf16.gmra.mrb[0].mxu0 %v345
        %v1007 = vpop.f32.mrb[0].mxu0
        %v1008 = vadd.f32 0.0, %v1007
        %v1009 = vpop.f32.mrb[0].mxu0
        %v1010 = vpop.f32.mrb[0].mxu0
        %v1011 = vadd.f32 0.0, %v1010
        %v1012 = vpop.f32.mrb[0].mxu0
        %1013 = vmatprep.mubr.bf16.mxu0 0
        %1014 = vmatmul.mubr.bf16.gmra.mrb[0].mxu0 %v348
        %v1015 = vpop.f32.mrb[0].mxu0
        %v1016 = vadd.f32 0.0, %v1015
        %v1017 = vpop.f32.mrb[0].mxu0
        %v1018 = vpop.f32.mrb[0].mxu0
        %v1019 = vadd.f32 0.0, %v1018
        %v1020 = vpop.f32.mrb[0].mxu0
        %1021 = vmatprep.mubr.bf16.mxu0 0
        %1022 = vmatmul.mubr.bf16.gmra.mrb[0].mxu0 %v351
        %v1023 = vpop.f32.mrb[0].mxu0
        %v1024 = vadd.f32 0.0, %v1023
        %v1025 = vpop.f32.mrb[0].mxu0
        %v1026 = vpop.f32.mrb[0].mxu0
        %v1027 = vadd.f32 0.0, %v1026
        %v1028 = vpop.f32.mrb[0].mxu0
        %1029 = vmatprep.mubr.bf16.mxu0 0
        %1030 = vmatmul.mubr.bf16.gmra.mrb[0].mxu0 %v354
        %v1031 = vpop.f32.mrb[0].mxu0
        %v1032 = vadd.f32 0.0, %v1031
        %v1033 = vpop.f32.mrb[0].mxu0
        %v1034 = vpop.f32.mrb[0].mxu0
        %v1035 = vadd.f32 0.0, %v1034
        %v1036 = vpop.f32.mrb[0].mxu0
        %1037 = vmatprep.mubr.bf16.mxu0 0
        %1038 = vmatmul.mubr.bf16.gmra.mrb[0].mxu0 %v357
        %v1039 = vpop.f32.mrb[0].mxu0
        %v1040 = vadd.f32 0.0, %v1039
        %v1041 = vpop.f32.mrb[0].mxu0
        %v1042 = vpop.f32.mrb[0].mxu0
        %v1043 = vadd.f32 0.0, %v1042
        %v1044 = vpop.f32.mrb[0].mxu0
        %1045 = vmatprep.mubr.bf16.mxu0 0
        %1046 = vmatmul.mubr.bf16.gmra.mrb[0].mxu0 %v360
        %v1047 = vpop.f32.mrb[0].mxu0
        %v1048 = vadd.f32 0.0, %v1047
        %v1049 = vpop.f32.mrb[0].mxu0
        %v1050 = vpop.f32.mrb[0].mxu0
        %v1051 = vadd.f32 0.0, %v1050
        %v1052 = vpop.f32.mrb[0].mxu0
        %1053 = vmatprep.mubr.bf16.mxu0 0
        %1054 = vmatmul.mubr.bf16.gmra.mrb[0].mxu0 %v363
        %v1055 = vpop.f32.mrb[0].mxu0
        %v1056 = vadd.f32 0.0, %v1055
        %v1057 = vpop.f32.mrb[0].mxu0
        %v1058 = vpop.f32.mrb[0].mxu0
        %v1059 = vadd.f32 0.0, %v1058
        %v1060 = vpop.f32.mrb[0].mxu0
        %1061 = vmatprep.mubr.bf16.mxu0 0
        %1062 = vmatmul.mubr.bf16.gmra.mrb[0].mxu0 %v366
        %v1063 = vpop.f32.mrb[0].mxu0
        %v1064 = vadd.f32 0.0, %v1063
        %v1065 = vpop.f32.mrb[0].mxu0
        %v1066 = vpop.f32.mrb[0].mxu0
        %v1067 = vadd.f32 0.0, %v1066
        %v1068 = vpop.f32.mrb[0].mxu0
        %1069 = vmatprep.mubr.bf16.mxu0 0
        %1070 = vmatmul.mubr.bf16.gmra.mrb[0].mxu0 %v369
        %v1071 = vpop.f32.mrb[0].mxu0
        %v1072 = vadd.f32 0.0, %v1071
        %v1073 = vpop.f32.mrb[0].mxu0
        %v1074 = vpop.f32.mrb[0].mxu0
        %v1075 = vadd.f32 0.0, %v1074
        %v1076 = vpop.f32.mrb[0].mxu0
        %1077 = vmatprep.mubr.bf16.mxu0 0
        %1078 = vmatmul.mubr.bf16.gmra.mrb[0].mxu0 %v372
        %v1079 = vpop.f32.mrb[0].mxu0
        %v1080 = vadd.f32 0.0, %v1079
        %v1081 = vpop.f32.mrb[0].mxu0
        %v1082 = vpop.f32.mrb[0].mxu0
        %v1083 = vadd.f32 0.0, %v1082
        %v1084 = vpop.f32.mrb[0].mxu0
        %1085 = vdwg.mxu0
        %vm1086 = vcmp.gt.f32.partialorder %v960, 1.0
        %vm1087 = vcmp.gt.f32.partialorder %v963, 1.0
        %vm1088 = vcmp.gt.f32.partialorder %v968, 1.0
        %vm1089 = vcmp.gt.f32.partialorder %v971, 1.0
        %vm1090 = vcmp.gt.f32.partialorder %v976, 1.0
        %vm1091 = vcmp.gt.f32.partialorder %v979, 1.0
        %vm1092 = vcmp.gt.f32.partialorder %v984, 1.0
        %vm1093 = vcmp.gt.f32.partialorder %v987, 1.0
        %vm1094 = vcmp.gt.f32.partialorder %v992, 1.0
        %vm1095 = vcmp.gt.f32.partialorder %v995, 1.0
        %vm1096 = vcmp.gt.f32.partialorder %v1000, 1.0
        %vm1097 = vcmp.gt.f32.partialorder %v1003, 1.0
        %vm1098 = vcmp.gt.f32.partialorder %v1008, 1.0
        %vm1099 = vcmp.gt.f32.partialorder %v1011, 1.0
        %vm1100 = vcmp.gt.f32.partialorder %v1016, 1.0
        %vm1101 = vcmp.gt.f32.partialorder %v1019, 1.0
        %vm1102 = vcmp.gt.f32.partialorder %v1024, 1.0
        %vm1103 = vcmp.gt.f32.partialorder %v1027, 1.0
        %vm1104 = vcmp.gt.f32.partialorder %v1032, 1.0
        %vm1105 = vcmp.gt.f32.partialorder %v1035, 1.0
        %vm1106 = vcmp.gt.f32.partialorder %v1040, 1.0
        %vm1107 = vcmp.gt.f32.partialorder %v1043, 1.0
        %vm1108 = vcmp.gt.f32.partialorder %v1048, 1.0
        %vm1109 = vcmp.gt.f32.partialorder %v1051, 1.0
        %vm1110 = vcmp.gt.f32.partialorder %v1056, 1.0
        %vm1111 = vcmp.gt.f32.partialorder %v1059, 1.0
        %vm1112 = vcmp.gt.f32.partialorder %v1064, 1.0
        %vm1113 = vcmp.gt.f32.partialorder %v1067, 1.0
        %vm1114 = vcmp.gt.f32.partialorder %v1072, 1.0
        %vm1115 = vcmp.gt.f32.partialorder %v1075, 1.0
        %vm1116 = vcmp.gt.f32.partialorder %v1080, 1.0
        %vm1117 = vcmp.gt.f32.partialorder %v1083, 1.0
        %v1118 = vsel %vm1086, 1, 0
        %v1119 = vsel %vm1087, 1, 0
        %v1120 = vsel %vm1088, 1, 0
        %v1121 = vsel %vm1089, 1, 0
        %v1122 = vsel %vm1090, 1, 0
        %v1123 = vsel %vm1091, 1, 0
        %v1124 = vsel %vm1092, 1, 0
        %v1125 = vsel %vm1093, 1, 0
        %v1126 = vsel %vm1094, 1, 0
        %v1127 = vsel %vm1095, 1, 0
        %v1128 = vsel %vm1096, 1, 0
        %v1129 = vsel %vm1097, 1, 0
        %v1130 = vsel %vm1098, 1, 0
        %v1131 = vsel %vm1099, 1, 0
        %v1132 = vsel %vm1100, 1, 0
        %v1133 = vsel %vm1101, 1, 0
        %v1134 = vsel %vm1102, 1, 0
        %v1135 = vsel %vm1103, 1, 0
        %v1136 = vsel %vm1104, 1, 0
        %v1137 = vsel %vm1105, 1, 0
        %v1138 = vsel %vm1106, 1, 0
        %v1139 = vsel %vm1107, 1, 0
        %v1140 = vsel %vm1108, 1, 0
        %v1141 = vsel %vm1109, 1, 0
        %v1142 = vsel %vm1110, 1, 0
        %v1143 = vsel %vm1111, 1, 0
        %v1144 = vsel %vm1112, 1, 0
        %v1145 = vsel %vm1113, 1, 0
        %v1146 = vsel %vm1114, 1, 0
        %v1147 = vsel %vm1115, 1, 0
        %v1148 = vsel %vm1116, 1, 0
        %v1149 = vsel %vm1117, 1, 0
        %v1150 = vcvt.s32.f32 %v1118
        %v1151 = vcvt.s32.f32 %v1119
        %v1152 = vcvt.s32.f32 %v1120
        %v1153 = vcvt.s32.f32 %v1121
        %v1154 = vcvt.s32.f32 %v1122
        %v1155 = vcvt.s32.f32 %v1123
        %v1156 = vcvt.s32.f32 %v1124
        %v1157 = vcvt.s32.f32 %v1125
        %v1158 = vcvt.s32.f32 %v1126
        %v1159 = vcvt.s32.f32 %v1127
        %v1160 = vcvt.s32.f32 %v1128
        %v1161 = vcvt.s32.f32 %v1129
        %v1162 = vcvt.s32.f32 %v1130
        %v1163 = vcvt.s32.f32 %v1131
        %v1164 = vcvt.s32.f32 %v1132
        %v1165 = vcvt.s32.f32 %v1133
        %v1166 = vcvt.s32.f32 %v1134
        %v1167 = vcvt.s32.f32 %v1135
        %v1168 = vcvt.s32.f32 %v1136
        %v1169 = vcvt.s32.f32 %v1137
        %v1170 = vcvt.s32.f32 %v1138
        %v1171 = vcvt.s32.f32 %v1139
        %v1172 = vcvt.s32.f32 %v1140
        %v1173 = vcvt.s32.f32 %v1141
        %v1174 = vcvt.s32.f32 %v1142
        %v1175 = vcvt.s32.f32 %v1143
        %v1176 = vcvt.s32.f32 %v1144
        %v1177 = vcvt.s32.f32 %v1145
        %v1178 = vcvt.s32.f32 %v1146
        %v1179 = vcvt.s32.f32 %v1147
        %v1180 = vcvt.s32.f32 %v1148
        %v1181 = vcvt.s32.f32 %v1149
        %vm1182 = vcmp.gt.f32.partialorder %v1150, 1.0
        %vm1183 = vcmp.gt.f32.partialorder %v1151, 1.0
        %vm1184 = vcmp.gt.f32.partialorder %v1152, 1.0
        %vm1185 = vcmp.gt.f32.partialorder %v1153, 1.0
        %vm1186 = vcmp.gt.f32.partialorder %v1154, 1.0
        %vm1187 = vcmp.gt.f32.partialorder %v1155, 1.0
        %vm1188 = vcmp.gt.f32.partialorder %v1156, 1.0
        %vm1189 = vcmp.gt.f32.partialorder %v1157, 1.0
        %vm1190 = vcmp.gt.f32.partialorder %v1158, 1.0
        %vm1191 = vcmp.gt.f32.partialorder %v1159, 1.0
        %vm1192 = vcmp.gt.f32.partialorder %v1160, 1.0
        %vm1193 = vcmp.gt.f32.partialorder %v1161, 1.0
        %vm1194 = vcmp.gt.f32.partialorder %v1162, 1.0
        %vm1195 = vcmp.gt.f32.partialorder %v1163, 1.0
        %vm1196 = vcmp.gt.f32.partialorder %v1164, 1.0
        %vm1197 = vcmp.gt.f32.partialorder %v1165, 1.0
        %vm1198 = vcmp.gt.f32.partialorder %v1166, 1.0
        %vm1199 = vcmp.gt.f32.partialorder %v1167, 1.0
        %vm1200 = vcmp.gt.f32.partialorder %v1168, 1.0
        %vm1201 = vcmp.gt.f32.partialorder %v1169, 1.0
        %vm1202 = vcmp.gt.f32.partialorder %v1170, 1.0
        %vm1203 = vcmp.gt.f32.partialorder %v1171, 1.0
        %vm1204 = vcmp.gt.f32.partialorder %v1172, 1.0
        %vm1205 = vcmp.gt.f32.partialorder %v1173, 1.0
        %vm1206 = vcmp.gt.f32.partialorder %v1174, 1.0
        %vm1207 = vcmp.gt.f32.partialorder %v1175, 1.0
        %vm1208 = vcmp.gt.f32.partialorder %v1176, 1.0
        %vm1209 = vcmp.gt.f32.partialorder %v1177, 1.0
        %vm1210 = vcmp.gt.f32.partialorder %v1178, 1.0
        %vm1211 = vcmp.gt.f32.partialorder %v1179, 1.0
        %vm1212 = vcmp.gt.f32.partialorder %v1180, 1.0
        %vm1213 = vcmp.gt.f32.partialorder %v1181, 1.0
        %v1214 = vsel %vm1182, 1, 0
        %v1215 = vsel %vm1183, 1, 0
        %v1216 = vsel %vm1184, 1, 0
        %v1217 = vsel %vm1185, 1, 0
        %v1218 = vsel %vm1186, 1, 0
        %v1219 = vsel %vm1187, 1, 0
        %v1220 = vsel %vm1188, 1, 0
        %v1221 = vsel %vm1189, 1, 0
        %v1222 = vsel %vm1190, 1, 0
        %v1223 = vsel %vm1191, 1, 0
        %v1224 = vsel %vm1192, 1, 0
        %v1225 = vsel %vm1193, 1, 0
        %v1226 = vsel %vm1194, 1, 0
        %v1227 = vsel %vm1195, 1, 0
        %v1228 = vsel %vm1196, 1, 0
        %v1229 = vsel %vm1197, 1, 0
        %v1230 = vsel %vm1198, 1, 0
        %v1231 = vsel %vm1199, 1, 0
        %v1232 = vsel %vm1200, 1, 0
        %v1233 = vsel %vm1201, 1, 0
        %v1234 = vsel %vm1202, 1, 0
        %v1235 = vsel %vm1203, 1, 0
        %v1236 = vsel %vm1204, 1, 0
        %v1237 = vsel %vm1205, 1, 0
        %v1238 = vsel %vm1206, 1, 0
        %v1239 = vsel %vm1207, 1, 0
        %v1240 = vsel %vm1208, 1, 0
        %v1241 = vsel %vm1209, 1, 0
        %v1242 = vsel %vm1210, 1, 0
        %v1243 = vsel %vm1211, 1, 0
        %v1244 = vsel %vm1212, 1, 0
        %v1245 = vsel %vm1213, 1, 0
        %v1246 = vcvt.s32.f32 %v1214
        %v1247 = vcvt.s32.f32 %v1215
        %v1248 = vcvt.s32.f32 %v1216
        %v1249 = vcvt.s32.f32 %v1217
        %v1250 = vcvt.s32.f32 %v1218
        %v1251 = vcvt.s32.f32 %v1219
        %v1252 = vcvt.s32.f32 %v1220
        %v1253 = vcvt.s32.f32 %v1221
        %v1254 = vcvt.s32.f32 %v1222
        %v1255 = vcvt.s32.f32 %v1223
        %v1256 = vcvt.s32.f32 %v1224
        %v1257 = vcvt.s32.f32 %v1225
        %v1258 = vcvt.s32.f32 %v1226
        %v1259 = vcvt.s32.f32 %v1227
        %v1260 = vcvt.s32.f32 %v1228
        %v1261 = vcvt.s32.f32 %v1229
        %v1262 = vcvt.s32.f32 %v1230
        %v1263 = vcvt.s32.f32 %v1231
        %v1264 = vcvt.s32.f32 %v1232
        %v1265 = vcvt.s32.f32 %v1233
        %v1266 = vcvt.s32.f32 %v1234
        %v1267 = vcvt.s32.f32 %v1235
        %v1268 = vcvt.s32.f32 %v1236
        %v1269 = vcvt.s32.f32 %v1237
        %v1270 = vcvt.s32.f32 %v1238
        %v1271 = vcvt.s32.f32 %v1239
        %v1272 = vcvt.s32.f32 %v1240
        %v1273 = vcvt.s32.f32 %v1241
        %v1274 = vcvt.s32.f32 %v1242
        %v1275 = vcvt.s32.f32 %v1243
        %v1276 = vcvt.s32.f32 %v1244
        %v1277 = vcvt.s32.f32 %v1245
        %v1278 = vpack.c.bf16 %v1247, %v1246
        %v1279 = vpack.c.bf16 %v1249, %v1248
        %v1280 = vpack.c.bf16 %v1251, %v1250
        %v1281 = vpack.c.bf16 %v1253, %v1252
        %v1282 = vpack.c.bf16 %v1255, %v1254
        %v1283 = vpack.c.bf16 %v1257, %v1256
        %v1284 = vpack.c.bf16 %v1259, %v1258
        %v1285 = vpack.c.bf16 %v1261, %v1260
        %v1286 = vpack.c.bf16 %v1263, %v1262
        %v1287 = vpack.c.bf16 %v1265, %v1264
        %v1288 = vpack.c.bf16 %v1267, %v1266
        %v1289 = vpack.c.bf16 %v1269, %v1268
        %v1290 = vpack.c.bf16 %v1271, %v1270
        %v1291 = vpack.c.bf16 %v1273, %v1272
        %v1292 = vpack.c.bf16 %v1275, %v1274
        %v1293 = vpack.c.bf16 %v1277, %v1276
        %1294 = vmatprep.subr.bf16.mxu0 0
        %1295 = vmatpush1.bf16.msra.mxu0 %v1278
        %1296 = vmatprep.subr.bf16.mxu0 0
        %1297 = vmatpush1.bf16.msra.mxu0 %v1279
        %1298 = vmatprep.subr.bf16.mxu0 0
        %1299 = vmatpush1.bf16.msra.mxu0 %v1280
        %1300 = vmatprep.subr.bf16.mxu0 0
        %1301 = vmatpush1.bf16.msra.mxu0 %v1281
        %1302 = vmatprep.subr.bf16.mxu0 0
        %1303 = vmatpush1.bf16.msra.mxu0 %v1282
        %1304 = vmatprep.subr.bf16.mxu0 0
        %1305 = vmatpush1.bf16.msra.mxu0 %v1283
        %1306 = vmatprep.subr.bf16.mxu0 0
        %1307 = vmatpush1.bf16.msra.mxu0 %v1284
        %1308 = vmatprep.subr.bf16.mxu0 0
        %1309 = vmatpush1.bf16.msra.mxu0 %v1285
        %1310 = vmatprep.subr.bf16.mxu0 0
        %1311 = vmatpush1.bf16.msra.mxu0 %v1286
        %1312 = vmatprep.subr.bf16.mxu0 0
        %1313 = vmatpush1.bf16.msra.mxu0 %v1287
        %1314 = vmatprep.subr.bf16.mxu0 0
        %1315 = vmatpush1.bf16.msra.mxu0 %v1288
        %1316 = vmatprep.subr.bf16.mxu0 0
        %1317 = vmatpush1.bf16.msra.mxu0 %v1289
        %1318 = vmatprep.subr.bf16.mxu0 0
        %1319 = vmatpush1.bf16.msra.mxu0 %v1290
        %1320 = vmatprep.subr.bf16.mxu0 0
        %1321 = vmatpush1.bf16.msra.mxu0 %v1291
        %1322 = vmatprep.subr.bf16.mxu0 0
        %1323 = vmatpush1.bf16.msra.mxu0 %v1292
        %1324 = vmatprep.subr.bf16.mxu0 0
        %1325 = vmatpush1.bf16.msra.mxu0 %v1293
        %1326 = vmatprep.mubr.bf16.mxu0 %v768
        %1327 = vmatmul.mubr.bf16.gmra.mrb[0].mxu0 %v767
        %v1328 = vpop.f32.mrb[0].mxu0
        %v1329 = vadd.f32 0.0, %v1328
        %v1330 = vpop.f32.mrb[0].mxu0
        %v1331 = vpop.f32.mrb[0].mxu0
        %v1332 = vadd.f32 0.0, %v1331
        %v1333 = vpop.f32.mrb[0].mxu0
        %1334 = vmatprep.mubr.bf16.mxu0 %v770
        %1335 = vmatmul.mubr.bf16.gmra.mrb[0].mxu0 %v769
        %v1336 = vpop.f32.mrb[0].mxu0
        %v1337 = vadd.f32 0.0, %v1336
        %v1338 = vpop.f32.mrb[0].mxu0
        %v1339 = vpop.f32.mrb[0].mxu0
        %v1340 = vadd.f32 0.0, %v1339
        %v1341 = vpop.f32.mrb[0].mxu0
        %1342 = vmatprep.mubr.bf16.mxu0 %v772
        %1343 = vmatmul.mubr.bf16.gmra.mrb[0].mxu0 %v771
        %v1344 = vpop.f32.mrb[0].mxu0
        %v1345 = vadd.f32 0.0, %v1344
        %v1346 = vpop.f32.mrb[0].mxu0
        %v1347 = vpop.f32.mrb[0].mxu0
        %v1348 = vadd.f32 0.0, %v1347
        %v1349 = vpop.f32.mrb[0].mxu0
        %1350 = vmatprep.mubr.bf16.mxu0 %v774
        %1351 = vmatmul.mubr.bf16.gmra.mrb[0].mxu0 %v773
        %v1352 = vpop.f32.mrb[0].mxu0
        %v1353 = vadd.f32 0.0, %v1352
        %v1354 = vpop.f32.mrb[0].mxu0
        %v1355 = vpop.f32.mrb[0].mxu0
        %v1356 = vadd.f32 0.0, %v1355
        %v1357 = vpop.f32.mrb[0].mxu0
        %1358 = vdwg.mxu0
        %vm1359 = vcmp.gt.f32.partialorder %v1329, 1.0
        %vm1360 = vcmp.gt.f32.partialorder %v1332, 1.0
        %vm1361 = vcmp.gt.f32.partialorder %v1337, 1.0
        %vm1362 = vcmp.gt.f32.partialorder %v1340, 1.0
        %vm1363 = vcmp.gt.f32.partialorder %v1345, 1.0
        %vm1364 = vcmp.gt.f32.partialorder %v1348, 1.0
        %vm1365 = vcmp.gt.f32.partialorder %v1353, 1.0
        %vm1366 = vcmp.gt.f32.partialorder %v1356, 1.0
        %v1367 = vsel %vm1359, 1, 0
        %v1368 = vsel %vm1360, 1, 0
        %v1369 = vsel %vm1361, 1, 0
        %v1370 = vsel %vm1362, 1, 0
        %v1371 = vsel %vm1363, 1, 0
        %v1372 = vsel %vm1364, 1, 0
        %v1373 = vsel %vm1365, 1, 0
        %v1374 = vsel %vm1366, 1, 0
        %v1375 = vcvt.s32.f32 %v1367
        %v1376 = vcvt.s32.f32 %v1368
        %v1377 = vcvt.s32.f32 %v1369
        %v1378 = vcvt.s32.f32 %v1370
        %v1379 = vcvt.s32.f32 %v1371
        %v1380 = vcvt.s32.f32 %v1372
        %v1381 = vcvt.s32.f32 %v1373
        %v1382 = vcvt.s32.f32 %v1374
        %v1383 = vpack.c.bf16 %v1376, %v1375
        %v1384 = vpack.c.bf16 %v1378, %v1377
        %v1385 = vpack.c.bf16 %v1380, %v1379
        %v1386 = vpack.c.bf16 %v1382, %v1381
        %v1391 = vunpack.c.l.b16 %v1383
        %v1392 = vunpack.c.h.b16 %v1383
        %v1393 = vunpack.c.l.b16 %v1384
        %v1394 = vunpack.c.h.b16 %v1384
        %v1395 = vunpack.c.l.b16 %v1385
        %v1396 = vunpack.c.h.b16 %v1385
        %v1397 = vunpack.c.l.b16 %v1386
        %v1398 = vunpack.c.h.b16 %v1386
        %v1399 = vpack.c.b16 %v1391, %v1391
        %v1400 = vpack.c.b16 %v1392, %v1392
        %v1401 = vpack.c.b16 %v1393, %v1393
        %v1402 = vpack.c.b16 %v1394, %v1394
        %v1403 = vpack.c.b16 %v1395, %v1395
        %v1404 = vpack.c.b16 %v1396, %v1396
        %v1405 = vpack.c.b16 %v1397, %v1397
        %v1406 = vpack.c.b16 %v1398, %v1398
        %s1415 = scalar_lea.vmem %s189, 32 [#allocation5]
        %1416 = vst [vmem:[%s1415] sm:$0xf] %v1399
        %1417 = vst [vmem:[%s1415 + $0x4] sm:$0xf] %v1400
        %1418 = vst [vmem:[%s1415 + $0x8] sm:$0xf] %v1401
        %1419 = vst [vmem:[%s1415 + $0xc] sm:$0xf] %v1402
        %1420 = vst [vmem:[%s1415 + $0x10] sm:$0xf] %v1403
        %1421 = vst [vmem:[%s1415 + $0x14] sm:$0xf] %v1404
        %1422 = vst [vmem:[%s1415 + $0x18] sm:$0xf] %v1405
        %1423 = vst [vmem:[%s1415 + $0x1c] sm:$0xf] %v1406
        %s1424 = scalar_lea.vmem %s167, 128 [#allocation2]
        %v1425 = vld [vmem:[%s1424] sm:$0xff]
        %v1426 = vld [vmem:[%s1424 + $0x8] sm:$0xff]
        %v1427 = vld [vmem:[%s1424 + $0x10] sm:$0xff]
        %v1428 = vld [vmem:[%s1424 + $0x18] sm:$0xff]
        %v1429 = vld [vmem:[%s1424 + $0x20] sm:$0xff]
        %v1430 = vld [vmem:[%s1424 + $0x28] sm:$0xff]
        %v1431 = vld [vmem:[%s1424 + $0x30] sm:$0xff]
        %v1432 = vld [vmem:[%s1424 + $0x38] sm:$0xff]
        %v1433 = vpack.c.bf16 %v1426, %v1425
        %v1434 = vpack.c.bf16 %v1428, %v1427
        %v1435 = vpack.c.bf16 %v1430, %v1429
        %v1436 = vpack.c.bf16 %v1432, %v1431
        %1437 = vmatprep.subr.bf16.mxu0 0
        %1438 = vmatpush1.bf16.msra.mxu0 %v1433
        %1439 = vmatprep.subr.bf16.mxu0 0
        %1440 = vmatpush1.bf16.msra.mxu0 %v1434
        %1441 = vmatprep.subr.bf16.mxu0 0
        %1442 = vmatpush1.bf16.msra.mxu0 %v1435
        %1443 = vmatprep.subr.bf16.mxu0 0
        %1444 = vmatpush1.bf16.msra.mxu0 %v1436
        %1445 = vmatprep.subr.bf16.mxu0 0
        %1446 = vmatpush1.bf16.msra.mxu0 0
        %1447 = vmatprep.subr.bf16.mxu0 0
        %1448 = vmatpush1.bf16.msra.mxu0 0
        %1449 = vmatprep.subr.bf16.mxu0 0
        %1450 = vmatpush1.bf16.msra.mxu0 0
        %1451 = vmatprep.subr.bf16.mxu0 0
        %1452 = vmatpush1.bf16.msra.mxu0 0
        %1453 = vmatprep.subr.bf16.mxu0 0
        %1454 = vmatpush1.bf16.msra.mxu0 0
        %1455 = vmatprep.subr.bf16.mxu0 0
        %1456 = vmatpush1.bf16.msra.mxu0 0
        %1457 = vmatprep.subr.bf16.mxu0 0
        %1458 = vmatpush1.bf16.msra.mxu0 0
        %1459 = vmatprep.subr.bf16.mxu0 0
        %1460 = vmatpush1.bf16.msra.mxu0 0
        %1461 = vmatprep.subr.bf16.mxu0 0
        %1462 = vmatpush1.bf16.msra.mxu0 0
        %1463 = vmatprep.subr.bf16.mxu0 0
        %1464 = vmatpush1.bf16.msra.mxu0 0
        %1465 = vmatprep.subr.bf16.mxu0 0
        %1466 = vmatpush1.bf16.msra.mxu0 0
        %1467 = vmatprep.subr.bf16.mxu0 0
        %1468 = vmatpush1.bf16.msra.mxu0 0
        %1469 = vmatprep.mubr.bf16.mxu0 0
        %1470 = vmatmul.mubr.bf16.gmra.mrb[0].mxu0 %v327
        %v1471 = vpop.f32.mrb[0].mxu0
        %v1472 = vadd.f32 0.0, %v1471
        %v1473 = vpop.f32.mrb[0].mxu0
        %v1474 = vpop.f32.mrb[0].mxu0
        %v1475 = vadd.f32 0.0, %v1474
        %v1476 = vpop.f32.mrb[0].mxu0
        %1477 = vmatprep.mubr.bf16.mxu0 0
        %1478 = vmatmul.mubr.bf16.gmra.mrb[0].mxu0 %v330
        %v1479 = vpop.f32.mrb[0].mxu0
        %v1480 = vadd.f32 0.0, %v1479
        %v1481 = vpop.f32.mrb[0].mxu0
        %v1482 = vpop.f32.mrb[0].mxu0
        %v1483 = vadd.f32 0.0, %v1482
        %v1484 = vpop.f32.mrb[0].mxu0
        %1485 = vmatprep.mubr.bf16.mxu0 0
        %1486 = vmatmul.mubr.bf16.gmra.mrb[0].mxu0 %v333
        %v1487 = vpop.f32.mrb[0].mxu0
        %v1488 = vadd.f32 0.0, %v1487
        %v1489 = vpop.f32.mrb[0].mxu0
        %v1490 = vpop.f32.mrb[0].mxu0
        %v1491 = vadd.f32 0.0, %v1490
        %v1492 = vpop.f32.mrb[0].mxu0
        %1493 = vmatprep.mubr.bf16.mxu0 0
        %1494 = vmatmul.mubr.bf16.gmra.mrb[0].mxu0 %v336
        %v1495 = vpop.f32.mrb[0].mxu0
        %v1496 = vadd.f32 0.0, %v1495
        %v1497 = vpop.f32.mrb[0].mxu0
        %v1498 = vpop.f32.mrb[0].mxu0
        %v1499 = vadd.f32 0.0, %v1498
        %v1500 = vpop.f32.mrb[0].mxu0
        %1501 = vmatprep.mubr.bf16.mxu0 0
        %1502 = vmatmul.mubr.bf16.gmra.mrb[0].mxu0 %v339
        %v1503 = vpop.f32.mrb[0].mxu0
        %v1504 = vadd.f32 0.0, %v1503
        %v1505 = vpop.f32.mrb[0].mxu0
        %v1506 = vpop.f32.mrb[0].mxu0
        %v1507 = vadd.f32 0.0, %v1506
        %v1508 = vpop.f32.mrb[0].mxu0
        %1509 = vmatprep.mubr.bf16.mxu0 0
        %1510 = vmatmul.mubr.bf16.gmra.mrb[0].mxu0 %v342
        %v1511 = vpop.f32.mrb[0].mxu0
        %v1512 = vadd.f32 0.0, %v1511
        %v1513 = vpop.f32.mrb[0].mxu0
        %v1514 = vpop.f32.mrb[0].mxu0
        %v1515 = vadd.f32 0.0, %v1514
        %v1516 = vpop.f32.mrb[0].mxu0
        %1517 = vmatprep.mubr.bf16.mxu0 0
        %1518 = vmatmul.mubr.bf16.gmra.mrb[0].mxu0 %v345
        %v1519 = vpop.f32.mrb[0].mxu0
        %v1520 = vadd.f32 0.0, %v1519
        %v1521 = vpop.f32.mrb[0].mxu0
        %v1522 = vpop.f32.mrb[0].mxu0
        %v1523 = vadd.f32 0.0, %v1522
        %v1524 = vpop.f32.mrb[0].mxu0
        %1525 = vmatprep.mubr.bf16.mxu0 0
        %1526 = vmatmul.mubr.bf16.gmra.mrb[0].mxu0 %v348
        %v1527 = vpop.f32.mrb[0].mxu0
        %v1528 = vadd.f32 0.0, %v1527
        %v1529 = vpop.f32.mrb[0].mxu0
        %v1530 = vpop.f32.mrb[0].mxu0
        %v1531 = vadd.f32 0.0, %v1530
        %v1532 = vpop.f32.mrb[0].mxu0
        %1533 = vmatprep.mubr.bf16.mxu0 0
        %1534 = vmatmul.mubr.bf16.gmra.mrb[0].mxu0 %v351
        %v1535 = vpop.f32.mrb[0].mxu0
        %v1536 = vadd.f32 0.0, %v1535
        %v1537 = vpop.f32.mrb[0].mxu0
        %v1538 = vpop.f32.mrb[0].mxu0
        %v1539 = vadd.f32 0.0, %v1538
        %v1540 = vpop.f32.mrb[0].mxu0
        %1541 = vmatprep.mubr.bf16.mxu0 0
        %1542 = vmatmul.mubr.bf16.gmra.mrb[0].mxu0 %v354
        %v1543 = vpop.f32.mrb[0].mxu0
        %v1544 = vadd.f32 0.0, %v1543
        %v1545 = vpop.f32.mrb[0].mxu0
        %v1546 = vpop.f32.mrb[0].mxu0
        %v1547 = vadd.f32 0.0, %v1546
        %v1548 = vpop.f32.mrb[0].mxu0
        %1549 = vmatprep.mubr.bf16.mxu0 0
        %1550 = vmatmul.mubr.bf16.gmra.mrb[0].mxu0 %v357
        %v1551 = vpop.f32.mrb[0].mxu0
        %v1552 = vadd.f32 0.0, %v1551
        %v1553 = vpop.f32.mrb[0].mxu0
        %v1554 = vpop.f32.mrb[0].mxu0
        %v1555 = vadd.f32 0.0, %v1554
        %v1556 = vpop.f32.mrb[0].mxu0
        %1557 = vmatprep.mubr.bf16.mxu0 0
        %1558 = vmatmul.mubr.bf16.gmra.mrb[0].mxu0 %v360
        %v1559 = vpop.f32.mrb[0].mxu0
        %v1560 = vadd.f32 0.0, %v1559
        %v1561 = vpop.f32.mrb[0].mxu0
        %v1562 = vpop.f32.mrb[0].mxu0
        %v1563 = vadd.f32 0.0, %v1562
        %v1564 = vpop.f32.mrb[0].mxu0
        %1565 = vmatprep.mubr.bf16.mxu0 0
        %1566 = vmatmul.mubr.bf16.gmra.mrb[0].mxu0 %v363
        %v1567 = vpop.f32.mrb[0].mxu0
        %v1568 = vadd.f32 0.0, %v1567
        %v1569 = vpop.f32.mrb[0].mxu0
        %v1570 = vpop.f32.mrb[0].mxu0
        %v1571 = vadd.f32 0.0, %v1570
        %v1572 = vpop.f32.mrb[0].mxu0
        %1573 = vmatprep.mubr.bf16.mxu0 0
        %1574 = vmatmul.mubr.bf16.gmra.mrb[0].mxu0 %v366
        %v1575 = vpop.f32.mrb[0].mxu0
        %v1576 = vadd.f32 0.0, %v1575
        %v1577 = vpop.f32.mrb[0].mxu0
        %v1578 = vpop.f32.mrb[0].mxu0
        %v1579 = vadd.f32 0.0, %v1578
        %v1580 = vpop.f32.mrb[0].mxu0
        %1581 = vmatprep.mubr.bf16.mxu0 0
        %1582 = vmatmul.mubr.bf16.gmra.mrb[0].mxu0 %v369
        %v1583 = vpop.f32.mrb[0].mxu0
        %v1584 = vadd.f32 0.0, %v1583
        %v1585 = vpop.f32.mrb[0].mxu0
        %v1586 = vpop.f32.mrb[0].mxu0
        %v1587 = vadd.f32 0.0, %v1586
        %v1588 = vpop.f32.mrb[0].mxu0
        %1589 = vmatprep.mubr.bf16.mxu0 0
        %1590 = vmatmul.mubr.bf16.gmra.mrb[0].mxu0 %v372
        %v1591 = vpop.f32.mrb[0].mxu0
        %v1592 = vadd.f32 0.0, %v1591
        %v1593 = vpop.f32.mrb[0].mxu0
        %v1594 = vpop.f32.mrb[0].mxu0
        %v1595 = vadd.f32 0.0, %v1594
        %v1596 = vpop.f32.mrb[0].mxu0
        %1597 = vdwg.mxu0
        %vm1598 = vcmp.gt.f32.partialorder %v1472, 1.0
        %vm1599 = vcmp.gt.f32.partialorder %v1475, 1.0
        %vm1600 = vcmp.gt.f32.partialorder %v1480, 1.0
        %vm1601 = vcmp.gt.f32.partialorder %v1483, 1.0
        %vm1602 = vcmp.gt.f32.partialorder %v1488, 1.0
        %vm1603 = vcmp.gt.f32.partialorder %v1491, 1.0
        %vm1604 = vcmp.gt.f32.partialorder %v1496, 1.0
        %vm1605 = vcmp.gt.f32.partialorder %v1499, 1.0
        %vm1606 = vcmp.gt.f32.partialorder %v1504, 1.0
        %vm1607 = vcmp.gt.f32.partialorder %v1507, 1.0
        %vm1608 = vcmp.gt.f32.partialorder %v1512, 1.0
        %vm1609 = vcmp.gt.f32.partialorder %v1515, 1.0
        %vm1610 = vcmp.gt.f32.partialorder %v1520, 1.0
        %vm1611 = vcmp.gt.f32.partialorder %v1523, 1.0
        %vm1612 = vcmp.gt.f32.partialorder %v1528, 1.0
        %vm1613 = vcmp.gt.f32.partialorder %v1531, 1.0
        %vm1614 = vcmp.gt.f32.partialorder %v1536, 1.0
        %vm1615 = vcmp.gt.f32.partialorder %v1539, 1.0
        %vm1616 = vcmp.gt.f32.partialorder %v1544, 1.0
        %vm1617 = vcmp.gt.f32.partialorder %v1547, 1.0
        %vm1618 = vcmp.gt.f32.partialorder %v1552, 1.0
        %vm1619 = vcmp.gt.f32.partialorder %v1555, 1.0
        %vm1620 = vcmp.gt.f32.partialorder %v1560, 1.0
        %vm1621 = vcmp.gt.f32.partialorder %v1563, 1.0
        %vm1622 = vcmp.gt.f32.partialorder %v1568, 1.0
        %vm1623 = vcmp.gt.f32.partialorder %v1571, 1.0
        %vm1624 = vcmp.gt.f32.partialorder %v1576, 1.0
        %vm1625 = vcmp.gt.f32.partialorder %v1579, 1.0
        %vm1626 = vcmp.gt.f32.partialorder %v1584, 1.0
        %vm1627 = vcmp.gt.f32.partialorder %v1587, 1.0
        %vm1628 = vcmp.gt.f32.partialorder %v1592, 1.0
        %vm1629 = vcmp.gt.f32.partialorder %v1595, 1.0
        %v1630 = vsel %vm1598, 1, 0
        %v1631 = vsel %vm1599, 1, 0
        %v1632 = vsel %vm1600, 1, 0
        %v1633 = vsel %vm1601, 1, 0
        %v1634 = vsel %vm1602, 1, 0
        %v1635 = vsel %vm1603, 1, 0
        %v1636 = vsel %vm1604, 1, 0
        %v1637 = vsel %vm1605, 1, 0
        %v1638 = vsel %vm1606, 1, 0
        %v1639 = vsel %vm1607, 1, 0
        %v1640 = vsel %vm1608, 1, 0
        %v1641 = vsel %vm1609, 1, 0
        %v1642 = vsel %vm1610, 1, 0
        %v1643 = vsel %vm1611, 1, 0
        %v1644 = vsel %vm1612, 1, 0
        %v1645 = vsel %vm1613, 1, 0
        %v1646 = vsel %vm1614, 1, 0
        %v1647 = vsel %vm1615, 1, 0
        %v1648 = vsel %vm1616, 1, 0
        %v1649 = vsel %vm1617, 1, 0
        %v1650 = vsel %vm1618, 1, 0
        %v1651 = vsel %vm1619, 1, 0
        %v1652 = vsel %vm1620, 1, 0
        %v1653 = vsel %vm1621, 1, 0
        %v1654 = vsel %vm1622, 1, 0
        %v1655 = vsel %vm1623, 1, 0
        %v1656 = vsel %vm1624, 1, 0
        %v1657 = vsel %vm1625, 1, 0
        %v1658 = vsel %vm1626, 1, 0
        %v1659 = vsel %vm1627, 1, 0
        %v1660 = vsel %vm1628, 1, 0
        %v1661 = vsel %vm1629, 1, 0
        %v1662 = vcvt.s32.f32 %v1630
        %v1663 = vcvt.s32.f32 %v1631
        %v1664 = vcvt.s32.f32 %v1632
        %v1665 = vcvt.s32.f32 %v1633
        %v1666 = vcvt.s32.f32 %v1634
        %v1667 = vcvt.s32.f32 %v1635
        %v1668 = vcvt.s32.f32 %v1636
        %v1669 = vcvt.s32.f32 %v1637
        %v1670 = vcvt.s32.f32 %v1638
        %v1671 = vcvt.s32.f32 %v1639
        %v1672 = vcvt.s32.f32 %v1640
        %v1673 = vcvt.s32.f32 %v1641
        %v1674 = vcvt.s32.f32 %v1642
        %v1675 = vcvt.s32.f32 %v1643
        %v1676 = vcvt.s32.f32 %v1644
        %v1677 = vcvt.s32.f32 %v1645
        %v1678 = vcvt.s32.f32 %v1646
        %v1679 = vcvt.s32.f32 %v1647
        %v1680 = vcvt.s32.f32 %v1648
        %v1681 = vcvt.s32.f32 %v1649
        %v1682 = vcvt.s32.f32 %v1650
        %v1683 = vcvt.s32.f32 %v1651
        %v1684 = vcvt.s32.f32 %v1652
        %v1685 = vcvt.s32.f32 %v1653
        %v1686 = vcvt.s32.f32 %v1654
        %v1687 = vcvt.s32.f32 %v1655
        %v1688 = vcvt.s32.f32 %v1656
        %v1689 = vcvt.s32.f32 %v1657
        %v1690 = vcvt.s32.f32 %v1658
        %v1691 = vcvt.s32.f32 %v1659
        %v1692 = vcvt.s32.f32 %v1660
        %v1693 = vcvt.s32.f32 %v1661
        %vm1694 = vcmp.gt.f32.partialorder %v1662, 1.0
        %vm1695 = vcmp.gt.f32.partialorder %v1663, 1.0
        %vm1696 = vcmp.gt.f32.partialorder %v1664, 1.0
        %vm1697 = vcmp.gt.f32.partialorder %v1665, 1.0
        %vm1698 = vcmp.gt.f32.partialorder %v1666, 1.0
        %vm1699 = vcmp.gt.f32.partialorder %v1667, 1.0
        %vm1700 = vcmp.gt.f32.partialorder %v1668, 1.0
        %vm1701 = vcmp.gt.f32.partialorder %v1669, 1.0
        %vm1702 = vcmp.gt.f32.partialorder %v1670, 1.0
        %vm1703 = vcmp.gt.f32.partialorder %v1671, 1.0
        %vm1704 = vcmp.gt.f32.partialorder %v1672, 1.0
        %vm1705 = vcmp.gt.f32.partialorder %v1673, 1.0
        %vm1706 = vcmp.gt.f32.partialorder %v1674, 1.0
        %vm1707 = vcmp.gt.f32.partialorder %v1675, 1.0
        %vm1708 = vcmp.gt.f32.partialorder %v1676, 1.0
        %vm1709 = vcmp.gt.f32.partialorder %v1677, 1.0
        %vm1710 = vcmp.gt.f32.partialorder %v1678, 1.0
        %vm1711 = vcmp.gt.f32.partialorder %v1679, 1.0
        %vm1712 = vcmp.gt.f32.partialorder %v1680, 1.0
        %vm1713 = vcmp.gt.f32.partialorder %v1681, 1.0
        %vm1714 = vcmp.gt.f32.partialorder %v1682, 1.0
        %vm1715 = vcmp.gt.f32.partialorder %v1683, 1.0
        %vm1716 = vcmp.gt.f32.partialorder %v1684, 1.0
        %vm1717 = vcmp.gt.f32.partialorder %v1685, 1.0
        %vm1718 = vcmp.gt.f32.partialorder %v1686, 1.0
        %vm1719 = vcmp.gt.f32.partialorder %v1687, 1.0
        %vm1720 = vcmp.gt.f32.partialorder %v1688, 1.0
        %vm1721 = vcmp.gt.f32.partialorder %v1689, 1.0
        %vm1722 = vcmp.gt.f32.partialorder %v1690, 1.0
        %vm1723 = vcmp.gt.f32.partialorder %v1691, 1.0
        %vm1724 = vcmp.gt.f32.partialorder %v1692, 1.0
        %vm1725 = vcmp.gt.f32.partialorder %v1693, 1.0
        %v1726 = vsel %vm1694, 1, 0
        %v1727 = vsel %vm1695, 1, 0
        %v1728 = vsel %vm1696, 1, 0
        %v1729 = vsel %vm1697, 1, 0
        %v1730 = vsel %vm1698, 1, 0
        %v1731 = vsel %vm1699, 1, 0
        %v1732 = vsel %vm1700, 1, 0
        %v1733 = vsel %vm1701, 1, 0
        %v1734 = vsel %vm1702, 1, 0
        %v1735 = vsel %vm1703, 1, 0
        %v1736 = vsel %vm1704, 1, 0
        %v1737 = vsel %vm1705, 1, 0
        %v1738 = vsel %vm1706, 1, 0
        %v1739 = vsel %vm1707, 1, 0
        %v1740 = vsel %vm1708, 1, 0
        %v1741 = vsel %vm1709, 1, 0
        %v1742 = vsel %vm1710, 1, 0
        %v1743 = vsel %vm1711, 1, 0
        %v1744 = vsel %vm1712, 1, 0
        %v1745 = vsel %vm1713, 1, 0
        %v1746 = vsel %vm1714, 1, 0
        %v1747 = vsel %vm1715, 1, 0
        %v1748 = vsel %vm1716, 1, 0
        %v1749 = vsel %vm1717, 1, 0
        %v1750 = vsel %vm1718, 1, 0
        %v1751 = vsel %vm1719, 1, 0
        %v1752 = vsel %vm1720, 1, 0
        %v1753 = vsel %vm1721, 1, 0
        %v1754 = vsel %vm1722, 1, 0
        %v1755 = vsel %vm1723, 1, 0
        %v1756 = vsel %vm1724, 1, 0
        %v1757 = vsel %vm1725, 1, 0
        %v1758 = vcvt.s32.f32 %v1726
        %v1759 = vcvt.s32.f32 %v1727
        %v1760 = vcvt.s32.f32 %v1728
        %v1761 = vcvt.s32.f32 %v1729
        %v1762 = vcvt.s32.f32 %v1730
        %v1763 = vcvt.s32.f32 %v1731
        %v1764 = vcvt.s32.f32 %v1732
        %v1765 = vcvt.s32.f32 %v1733
        %v1766 = vcvt.s32.f32 %v1734
        %v1767 = vcvt.s32.f32 %v1735
        %v1768 = vcvt.s32.f32 %v1736
        %v1769 = vcvt.s32.f32 %v1737
        %v1770 = vcvt.s32.f32 %v1738
        %v1771 = vcvt.s32.f32 %v1739
        %v1772 = vcvt.s32.f32 %v1740
        %v1773 = vcvt.s32.f32 %v1741
        %v1774 = vcvt.s32.f32 %v1742
        %v1775 = vcvt.s32.f32 %v1743
        %v1776 = vcvt.s32.f32 %v1744
        %v1777 = vcvt.s32.f32 %v1745
        %v1778 = vcvt.s32.f32 %v1746
        %v1779 = vcvt.s32.f32 %v1747
        %v1780 = vcvt.s32.f32 %v1748
        %v1781 = vcvt.s32.f32 %v1749
        %v1782 = vcvt.s32.f32 %v1750
        %v1783 = vcvt.s32.f32 %v1751
        %v1784 = vcvt.s32.f32 %v1752
        %v1785 = vcvt.s32.f32 %v1753
        %v1786 = vcvt.s32.f32 %v1754
        %v1787 = vcvt.s32.f32 %v1755
        %v1788 = vcvt.s32.f32 %v1756
        %v1789 = vcvt.s32.f32 %v1757
        %v1790 = vpack.c.bf16 %v1759, %v1758
        %v1791 = vpack.c.bf16 %v1761, %v1760
        %v1792 = vpack.c.bf16 %v1763, %v1762
        %v1793 = vpack.c.bf16 %v1765, %v1764
        %v1794 = vpack.c.bf16 %v1767, %v1766
        %v1795 = vpack.c.bf16 %v1769, %v1768
        %v1796 = vpack.c.bf16 %v1771, %v1770
        %v1797 = vpack.c.bf16 %v1773, %v1772
        %v1798 = vpack.c.bf16 %v1775, %v1774
        %v1799 = vpack.c.bf16 %v1777, %v1776
        %v1800 = vpack.c.bf16 %v1779, %v1778
        %v1801 = vpack.c.bf16 %v1781, %v1780
        %v1802 = vpack.c.bf16 %v1783, %v1782
        %v1803 = vpack.c.bf16 %v1785, %v1784
        %v1804 = vpack.c.bf16 %v1787, %v1786
        %v1805 = vpack.c.bf16 %v1789, %v1788
        %1806 = vmatprep.subr.bf16.mxu0 0
        %1807 = vmatpush1.bf16.msra.mxu0 %v1790
        %1808 = vmatprep.subr.bf16.mxu0 0
        %1809 = vmatpush1.bf16.msra.mxu0 %v1791
        %1810 = vmatprep.subr.bf16.mxu0 0
        %1811 = vmatpush1.bf16.msra.mxu0 %v1792
        %1812 = vmatprep.subr.bf16.mxu0 0
        %1813 = vmatpush1.bf16.msra.mxu0 %v1793
        %1814 = vmatprep.subr.bf16.mxu0 0
        %1815 = vmatpush1.bf16.msra.mxu0 %v1794
        %1816 = vmatprep.subr.bf16.mxu0 0
        %1817 = vmatpush1.bf16.msra.mxu0 %v1795
        %1818 = vmatprep.subr.bf16.mxu0 0
        %1819 = vmatpush1.bf16.msra.mxu0 %v1796
        %1820 = vmatprep.subr.bf16.mxu0 0
        %1821 = vmatpush1.bf16.msra.mxu0 %v1797
        %1822 = vmatprep.subr.bf16.mxu0 0
        %1823 = vmatpush1.bf16.msra.mxu0 %v1798
        %1824 = vmatprep.subr.bf16.mxu0 0
        %1825 = vmatpush1.bf16.msra.mxu0 %v1799
        %1826 = vmatprep.subr.bf16.mxu0 0
        %1827 = vmatpush1.bf16.msra.mxu0 %v1800
        %1828 = vmatprep.subr.bf16.mxu0 0
        %1829 = vmatpush1.bf16.msra.mxu0 %v1801
        %1830 = vmatprep.subr.bf16.mxu0 0
        %1831 = vmatpush1.bf16.msra.mxu0 %v1802
        %1832 = vmatprep.subr.bf16.mxu0 0
        %1833 = vmatpush1.bf16.msra.mxu0 %v1803
        %1834 = vmatprep.subr.bf16.mxu0 0
        %1835 = vmatpush1.bf16.msra.mxu0 %v1804
        %1836 = vmatprep.subr.bf16.mxu0 0
        %1837 = vmatpush1.bf16.msra.mxu0 %v1805
        %1838 = vmatprep.mubr.bf16.mxu0 %v768
        %1839 = vmatmul.mubr.bf16.gmra.mrb[0].mxu0 %v767
        %v1840 = vpop.f32.mrb[0].mxu0
        %v1841 = vadd.f32 0.0, %v1840
        %v1842 = vpop.f32.mrb[0].mxu0
        %v1843 = vpop.f32.mrb[0].mxu0
        %v1844 = vadd.f32 0.0, %v1843
        %v1845 = vpop.f32.mrb[0].mxu0
        %1846 = vmatprep.mubr.bf16.mxu0 %v770
        %1847 = vmatmul.mubr.bf16.gmra.mrb[0].mxu0 %v769
        %v1848 = vpop.f32.mrb[0].mxu0
        %v1849 = vadd.f32 0.0, %v1848
        %v1850 = vpop.f32.mrb[0].mxu0
        %v1851 = vpop.f32.mrb[0].mxu0
        %v1852 = vadd.f32 0.0, %v1851
        %v1853 = vpop.f32.mrb[0].mxu0
        %1854 = vmatprep.mubr.bf16.mxu0 %v772
        %1855 = vmatmul.mubr.bf16.gmra.mrb[0].mxu0 %v771
        %v1856 = vpop.f32.mrb[0].mxu0
        %v1857 = vadd.f32 0.0, %v1856
        %v1858 = vpop.f32.mrb[0].mxu0
        %v1859 = vpop.f32.mrb[0].mxu0
        %v1860 = vadd.f32 0.0, %v1859
        %v1861 = vpop.f32.mrb[0].mxu0
        %1862 = vmatprep.mubr.bf16.mxu0 %v774
        %1863 = vmatmul.mubr.bf16.gmra.mrb[0].mxu0 %v773
        %v1864 = vpop.f32.mrb[0].mxu0
        %v1865 = vadd.f32 0.0, %v1864
        %v1866 = vpop.f32.mrb[0].mxu0
        %v1867 = vpop.f32.mrb[0].mxu0
        %v1868 = vadd.f32 0.0, %v1867
        %v1869 = vpop.f32.mrb[0].mxu0
        %1870 = vdwg.mxu0
        %vm1871 = vcmp.gt.f32.partialorder %v1841, 1.0
        %vm1872 = vcmp.gt.f32.partialorder %v1844, 1.0
        %vm1873 = vcmp.gt.f32.partialorder %v1849, 1.0
        %vm1874 = vcmp.gt.f32.partialorder %v1852, 1.0
        %vm1875 = vcmp.gt.f32.partialorder %v1857, 1.0
        %vm1876 = vcmp.gt.f32.partialorder %v1860, 1.0
        %vm1877 = vcmp.gt.f32.partialorder %v1865, 1.0
        %vm1878 = vcmp.gt.f32.partialorder %v1868, 1.0
        %v1879 = vsel %vm1871, 1, 0
        %v1880 = vsel %vm1872, 1, 0
        %v1881 = vsel %vm1873, 1, 0
        %v1882 = vsel %vm1874, 1, 0
        %v1883 = vsel %vm1875, 1, 0
        %v1884 = vsel %vm1876, 1, 0
        %v1885 = vsel %vm1877, 1, 0
        %v1886 = vsel %vm1878, 1, 0
        %v1887 = vcvt.s32.f32 %v1879
        %v1888 = vcvt.s32.f32 %v1880
        %v1889 = vcvt.s32.f32 %v1881
        %v1890 = vcvt.s32.f32 %v1882
        %v1891 = vcvt.s32.f32 %v1883
        %v1892 = vcvt.s32.f32 %v1884
        %v1893 = vcvt.s32.f32 %v1885
        %v1894 = vcvt.s32.f32 %v1886
        %v1895 = vpack.c.bf16 %v1888, %v1887
        %v1896 = vpack.c.bf16 %v1890, %v1889
        %v1897 = vpack.c.bf16 %v1892, %v1891
        %v1898 = vpack.c.bf16 %v1894, %v1893
        %v1903 = vunpack.c.l.b16 %v1895
        %v1904 = vunpack.c.h.b16 %v1895
        %v1905 = vunpack.c.l.b16 %v1896
        %v1906 = vunpack.c.h.b16 %v1896
        %v1907 = vunpack.c.l.b16 %v1897
        %v1908 = vunpack.c.h.b16 %v1897
        %v1909 = vunpack.c.l.b16 %v1898
        %v1910 = vunpack.c.h.b16 %v1898
        %v1911 = vpack.c.b16 %v1903, %v1903
        %v1912 = vpack.c.b16 %v1904, %v1904
        %v1913 = vpack.c.b16 %v1905, %v1905
        %v1914 = vpack.c.b16 %v1906, %v1906
        %v1915 = vpack.c.b16 %v1907, %v1907
        %v1916 = vpack.c.b16 %v1908, %v1908
        %v1917 = vpack.c.b16 %v1909, %v1909
        %v1918 = vpack.c.b16 %v1910, %v1910
        %s1927 = scalar_lea.vmem %s189, 64 [#allocation5]
        %1928 = vst [vmem:[%s1927] sm:$0xf] %v1911
        %1929 = vst [vmem:[%s1927 + $0x4] sm:$0xf] %v1912
        %1930 = vst [vmem:[%s1927 + $0x8] sm:$0xf] %v1913
        %1931 = vst [vmem:[%s1927 + $0xc] sm:$0xf] %v1914
        %1932 = vst [vmem:[%s1927 + $0x10] sm:$0xf] %v1915
        %1933 = vst [vmem:[%s1927 + $0x14] sm:$0xf] %v1916
        %1934 = vst [vmem:[%s1927 + $0x18] sm:$0xf] %v1917
        %1935 = vst [vmem:[%s1927 + $0x1c] sm:$0xf] %v1918
        %s1936 = scalar_lea.vmem %s167, 192 [#allocation2]
        %v1937 = vld [vmem:[%s1936] sm:$0xff]
        %v1938 = vld [vmem:[%s1936 + $0x8] sm:$0xff]
        %v1939 = vld [vmem:[%s1936 + $0x10] sm:$0xff]
        %v1940 = vld [vmem:[%s1936 + $0x18] sm:$0xff]
        %v1941 = vld [vmem:[%s1936 + $0x20] sm:$0xff]
        %v1942 = vld [vmem:[%s1936 + $0x28] sm:$0xff]
        %v1943 = vld [vmem:[%s1936 + $0x30] sm:$0xff]
        %v1944 = vld [vmem:[%s1936 + $0x38] sm:$0xff]
        %v1945 = vpack.c.bf16 %v1938, %v1937
        %v1946 = vpack.c.bf16 %v1940, %v1939
        %v1947 = vpack.c.bf16 %v1942, %v1941
        %v1948 = vpack.c.bf16 %v1944, %v1943
        %1949 = vmatprep.subr.bf16.mxu0 0
        %1950 = vmatpush1.bf16.msra.mxu0 %v1945
        %1951 = vmatprep.subr.bf16.mxu0 0
        %1952 = vmatpush1.bf16.msra.mxu0 %v1946
        %1953 = vmatprep.subr.bf16.mxu0 0
        %1954 = vmatpush1.bf16.msra.mxu0 %v1947
        %1955 = vmatprep.subr.bf16.mxu0 0
        %1956 = vmatpush1.bf16.msra.mxu0 %v1948
        %1957 = vmatprep.subr.bf16.mxu0 0
        %1958 = vmatpush1.bf16.msra.mxu0 0
        %1959 = vmatprep.subr.bf16.mxu0 0
        %1960 = vmatpush1.bf16.msra.mxu0 0
        %1961 = vmatprep.subr.bf16.mxu0 0
        %1962 = vmatpush1.bf16.msra.mxu0 0
        %1963 = vmatprep.subr.bf16.mxu0 0
        %1964 = vmatpush1.bf16.msra.mxu0 0
        %1965 = vmatprep.subr.bf16.mxu0 0
        %1966 = vmatpush1.bf16.msra.mxu0 0
        %1967 = vmatprep.subr.bf16.mxu0 0
        %1968 = vmatpush1.bf16.msra.mxu0 0
        %1969 = vmatprep.subr.bf16.mxu0 0
        %1970 = vmatpush1.bf16.msra.mxu0 0
        %1971 = vmatprep.subr.bf16.mxu0 0
        %1972 = vmatpush1.bf16.msra.mxu0 0
        %1973 = vmatprep.subr.bf16.mxu0 0
        %1974 = vmatpush1.bf16.msra.mxu0 0
        %1975 = vmatprep.subr.bf16.mxu0 0
        %1976 = vmatpush1.bf16.msra.mxu0 0
        %1977 = vmatprep.subr.bf16.mxu0 0
        %1978 = vmatpush1.bf16.msra.mxu0 0
        %1979 = vmatprep.subr.bf16.mxu0 0
        %1980 = vmatpush1.bf16.msra.mxu0 0
        %1981 = vmatprep.mubr.bf16.mxu0 0
        %1982 = vmatmul.mubr.bf16.gmra.mrb[0].mxu0 %v327
        %v1983 = vpop.f32.mrb[0].mxu0
        %v1984 = vadd.f32 0.0, %v1983
        %v1985 = vpop.f32.mrb[0].mxu0
        %v1986 = vpop.f32.mrb[0].mxu0
        %v1987 = vadd.f32 0.0, %v1986
        %v1988 = vpop.f32.mrb[0].mxu0
        %1989 = vmatprep.mubr.bf16.mxu0 0
        %1990 = vmatmul.mubr.bf16.gmra.mrb[0].mxu0 %v330
        %v1991 = vpop.f32.mrb[0].mxu0
        %v1992 = vadd.f32 0.0, %v1991
        %v1993 = vpop.f32.mrb[0].mxu0
        %v1994 = vpop.f32.mrb[0].mxu0
        %v1995 = vadd.f32 0.0, %v1994
        %v1996 = vpop.f32.mrb[0].mxu0
        %1997 = vmatprep.mubr.bf16.mxu0 0
        %1998 = vmatmul.mubr.bf16.gmra.mrb[0].mxu0 %v333
        %v1999 = vpop.f32.mrb[0].mxu0
        %v2000 = vadd.f32 0.0, %v1999
        %v2001 = vpop.f32.mrb[0].mxu0
        %v2002 = vpop.f32.mrb[0].mxu0
        %v2003 = vadd.f32 0.0, %v2002
        %v2004 = vpop.f32.mrb[0].mxu0
        %2005 = vmatprep.mubr.bf16.mxu0 0
        %2006 = vmatmul.mubr.bf16.gmra.mrb[0].mxu0 %v336
        %v2007 = vpop.f32.mrb[0].mxu0
        %v2008 = vadd.f32 0.0, %v2007
        %v2009 = vpop.f32.mrb[0].mxu0
        %v2010 = vpop.f32.mrb[0].mxu0
        %v2011 = vadd.f32 0.0, %v2010
        %v2012 = vpop.f32.mrb[0].mxu0
        %2013 = vmatprep.mubr.bf16.mxu0 0
        %2014 = vmatmul.mubr.bf16.gmra.mrb[0].mxu0 %v339
        %v2015 = vpop.f32.mrb[0].mxu0
        %v2016 = vadd.f32 0.0, %v2015
        %v2017 = vpop.f32.mrb[0].mxu0
        %v2018 = vpop.f32.mrb[0].mxu0
        %v2019 = vadd.f32 0.0, %v2018
        %v2020 = vpop.f32.mrb[0].mxu0
        %2021 = vmatprep.mubr.bf16.mxu0 0
        %2022 = vmatmul.mubr.bf16.gmra.mrb[0].mxu0 %v342
        %v2023 = vpop.f32.mrb[0].mxu0
        %v2024 = vadd.f32 0.0, %v2023
        %v2025 = vpop.f32.mrb[0].mxu0
        %v2026 = vpop.f32.mrb[0].mxu0
        %v2027 = vadd.f32 0.0, %v2026
        %v2028 = vpop.f32.mrb[0].mxu0
        %2029 = vmatprep.mubr.bf16.mxu0 0
        %2030 = vmatmul.mubr.bf16.gmra.mrb[0].mxu0 %v345
        %v2031 = vpop.f32.mrb[0].mxu0
        %v2032 = vadd.f32 0.0, %v2031
        %v2033 = vpop.f32.mrb[0].mxu0
        %v2034 = vpop.f32.mrb[0].mxu0
        %v2035 = vadd.f32 0.0, %v2034
        %v2036 = vpop.f32.mrb[0].mxu0
        %2037 = vmatprep.mubr.bf16.mxu0 0
        %2038 = vmatmul.mubr.bf16.gmra.mrb[0].mxu0 %v348
        %v2039 = vpop.f32.mrb[0].mxu0
        %v2040 = vadd.f32 0.0, %v2039
        %v2041 = vpop.f32.mrb[0].mxu0
        %v2042 = vpop.f32.mrb[0].mxu0
        %v2043 = vadd.f32 0.0, %v2042
        %v2044 = vpop.f32.mrb[0].mxu0
        %2045 = vmatprep.mubr.bf16.mxu0 0
        %2046 = vmatmul.mubr.bf16.gmra.mrb[0].mxu0 %v351
        %v2047 = vpop.f32.mrb[0].mxu0
        %v2048 = vadd.f32 0.0, %v2047
        %v2049 = vpop.f32.mrb[0].mxu0
        %v2050 = vpop.f32.mrb[0].mxu0
        %v2051 = vadd.f32 0.0, %v2050
        %v2052 = vpop.f32.mrb[0].mxu0
        %2053 = vmatprep.mubr.bf16.mxu0 0
        %2054 = vmatmul.mubr.bf16.gmra.mrb[0].mxu0 %v354
        %v2055 = vpop.f32.mrb[0].mxu0
        %v2056 = vadd.f32 0.0, %v2055
        %v2057 = vpop.f32.mrb[0].mxu0
        %v2058 = vpop.f32.mrb[0].mxu0
        %v2059 = vadd.f32 0.0, %v2058
        %v2060 = vpop.f32.mrb[0].mxu0
        %2061 = vmatprep.mubr.bf16.mxu0 0
        %2062 = vmatmul.mubr.bf16.gmra.mrb[0].mxu0 %v357
        %v2063 = vpop.f32.mrb[0].mxu0
        %v2064 = vadd.f32 0.0, %v2063
        %v2065 = vpop.f32.mrb[0].mxu0
        %v2066 = vpop.f32.mrb[0].mxu0
        %v2067 = vadd.f32 0.0, %v2066
        %v2068 = vpop.f32.mrb[0].mxu0
        %2069 = vmatprep.mubr.bf16.mxu0 0
        %2070 = vmatmul.mubr.bf16.gmra.mrb[0].mxu0 %v360
        %v2071 = vpop.f32.mrb[0].mxu0
        %v2072 = vadd.f32 0.0, %v2071
        %v2073 = vpop.f32.mrb[0].mxu0
        %v2074 = vpop.f32.mrb[0].mxu0
        %v2075 = vadd.f32 0.0, %v2074
        %v2076 = vpop.f32.mrb[0].mxu0
        %2077 = vmatprep.mubr.bf16.mxu0 0
        %2078 = vmatmul.mubr.bf16.gmra.mrb[0].mxu0 %v363
        %v2079 = vpop.f32.mrb[0].mxu0
        %v2080 = vadd.f32 0.0, %v2079
        %v2081 = vpop.f32.mrb[0].mxu0
        %v2082 = vpop.f32.mrb[0].mxu0
        %v2083 = vadd.f32 0.0, %v2082
        %v2084 = vpop.f32.mrb[0].mxu0
        %2085 = vmatprep.mubr.bf16.mxu0 0
        %2086 = vmatmul.mubr.bf16.gmra.mrb[0].mxu0 %v366
        %v2087 = vpop.f32.mrb[0].mxu0
        %v2088 = vadd.f32 0.0, %v2087
        %v2089 = vpop.f32.mrb[0].mxu0
        %v2090 = vpop.f32.mrb[0].mxu0
        %v2091 = vadd.f32 0.0, %v2090
        %v2092 = vpop.f32.mrb[0].mxu0
        %2093 = vmatprep.mubr.bf16.mxu0 0
        %2094 = vmatmul.mubr.bf16.gmra.mrb[0].mxu0 %v369
        %v2095 = vpop.f32.mrb[0].mxu0
        %v2096 = vadd.f32 0.0, %v2095
        %v2097 = vpop.f32.mrb[0].mxu0
        %v2098 = vpop.f32.mrb[0].mxu0
        %v2099 = vadd.f32 0.0, %v2098
        %v2100 = vpop.f32.mrb[0].mxu0
        %2101 = vmatprep.mubr.bf16.mxu0 0
        %2102 = vmatmul.mubr.bf16.gmra.mrb[0].mxu0 %v372
        %v2103 = vpop.f32.mrb[0].mxu0
        %v2104 = vadd.f32 0.0, %v2103
        %v2105 = vpop.f32.mrb[0].mxu0
        %v2106 = vpop.f32.mrb[0].mxu0
        %v2107 = vadd.f32 0.0, %v2106
        %v2108 = vpop.f32.mrb[0].mxu0
        %2109 = vdwg.mxu0
        %vm2110 = vcmp.gt.f32.partialorder %v1984, 1.0
        %vm2111 = vcmp.gt.f32.partialorder %v1987, 1.0
        %vm2112 = vcmp.gt.f32.partialorder %v1992, 1.0
        %vm2113 = vcmp.gt.f32.partialorder %v1995, 1.0
        %vm2114 = vcmp.gt.f32.partialorder %v2000, 1.0
        %vm2115 = vcmp.gt.f32.partialorder %v2003, 1.0
        %vm2116 = vcmp.gt.f32.partialorder %v2008, 1.0
        %vm2117 = vcmp.gt.f32.partialorder %v2011, 1.0
        %vm2118 = vcmp.gt.f32.partialorder %v2016, 1.0
        %vm2119 = vcmp.gt.f32.partialorder %v2019, 1.0
        %vm2120 = vcmp.gt.f32.partialorder %v2024, 1.0
        %vm2121 = vcmp.gt.f32.partialorder %v2027, 1.0
        %vm2122 = vcmp.gt.f32.partialorder %v2032, 1.0
        %vm2123 = vcmp.gt.f32.partialorder %v2035, 1.0
        %vm2124 = vcmp.gt.f32.partialorder %v2040, 1.0
        %vm2125 = vcmp.gt.f32.partialorder %v2043, 1.0
        %vm2126 = vcmp.gt.f32.partialorder %v2048, 1.0
        %vm2127 = vcmp.gt.f32.partialorder %v2051, 1.0
        %vm2128 = vcmp.gt.f32.partialorder %v2056, 1.0
        %vm2129 = vcmp.gt.f32.partialorder %v2059, 1.0
        %vm2130 = vcmp.gt.f32.partialorder %v2064, 1.0
        %vm2131 = vcmp.gt.f32.partialorder %v2067, 1.0
        %vm2132 = vcmp.gt.f32.partialorder %v2072, 1.0
        %vm2133 = vcmp.gt.f32.partialorder %v2075, 1.0
        %vm2134 = vcmp.gt.f32.partialorder %v2080, 1.0
        %vm2135 = vcmp.gt.f32.partialorder %v2083, 1.0
        %vm2136 = vcmp.gt.f32.partialorder %v2088, 1.0
        %vm2137 = vcmp.gt.f32.partialorder %v2091, 1.0
        %vm2138 = vcmp.gt.f32.partialorder %v2096, 1.0
        %vm2139 = vcmp.gt.f32.partialorder %v2099, 1.0
        %vm2140 = vcmp.gt.f32.partialorder %v2104, 1.0
        %vm2141 = vcmp.gt.f32.partialorder %v2107, 1.0
        %v2142 = vsel %vm2110, 1, 0
        %v2143 = vsel %vm2111, 1, 0
        %v2144 = vsel %vm2112, 1, 0
        %v2145 = vsel %vm2113, 1, 0
        %v2146 = vsel %vm2114, 1, 0
        %v2147 = vsel %vm2115, 1, 0
        %v2148 = vsel %vm2116, 1, 0
        %v2149 = vsel %vm2117, 1, 0
        %v2150 = vsel %vm2118, 1, 0
        %v2151 = vsel %vm2119, 1, 0
        %v2152 = vsel %vm2120, 1, 0
        %v2153 = vsel %vm2121, 1, 0
        %v2154 = vsel %vm2122, 1, 0
        %v2155 = vsel %vm2123, 1, 0
        %v2156 = vsel %vm2124, 1, 0
        %v2157 = vsel %vm2125, 1, 0
        %v2158 = vsel %vm2126, 1, 0
        %v2159 = vsel %vm2127, 1, 0
        %v2160 = vsel %vm2128, 1, 0
        %v2161 = vsel %vm2129, 1, 0
        %v2162 = vsel %vm2130, 1, 0
        %v2163 = vsel %vm2131, 1, 0
        %v2164 = vsel %vm2132, 1, 0
        %v2165 = vsel %vm2133, 1, 0
        %v2166 = vsel %vm2134, 1, 0
        %v2167 = vsel %vm2135, 1, 0
        %v2168 = vsel %vm2136, 1, 0
        %v2169 = vsel %vm2137, 1, 0
        %v2170 = vsel %vm2138, 1, 0
        %v2171 = vsel %vm2139, 1, 0
        %v2172 = vsel %vm2140, 1, 0
        %v2173 = vsel %vm2141, 1, 0
        %v2174 = vcvt.s32.f32 %v2142
        %v2175 = vcvt.s32.f32 %v2143
        %v2176 = vcvt.s32.f32 %v2144
        %v2177 = vcvt.s32.f32 %v2145
        %v2178 = vcvt.s32.f32 %v2146
        %v2179 = vcvt.s32.f32 %v2147
        %v2180 = vcvt.s32.f32 %v2148
        %v2181 = vcvt.s32.f32 %v2149
        %v2182 = vcvt.s32.f32 %v2150
        %v2183 = vcvt.s32.f32 %v2151
        %v2184 = vcvt.s32.f32 %v2152
        %v2185 = vcvt.s32.f32 %v2153
        %v2186 = vcvt.s32.f32 %v2154
        %v2187 = vcvt.s32.f32 %v2155
        %v2188 = vcvt.s32.f32 %v2156
        %v2189 = vcvt.s32.f32 %v2157
        %v2190 = vcvt.s32.f32 %v2158
        %v2191 = vcvt.s32.f32 %v2159
        %v2192 = vcvt.s32.f32 %v2160
        %v2193 = vcvt.s32.f32 %v2161
        %v2194 = vcvt.s32.f32 %v2162
        %v2195 = vcvt.s32.f32 %v2163
        %v2196 = vcvt.s32.f32 %v2164
        %v2197 = vcvt.s32.f32 %v2165
        %v2198 = vcvt.s32.f32 %v2166
        %v2199 = vcvt.s32.f32 %v2167
        %v2200 = vcvt.s32.f32 %v2168
        %v2201 = vcvt.s32.f32 %v2169
        %v2202 = vcvt.s32.f32 %v2170
        %v2203 = vcvt.s32.f32 %v2171
        %v2204 = vcvt.s32.f32 %v2172
        %v2205 = vcvt.s32.f32 %v2173
        %vm2206 = vcmp.gt.f32.partialorder %v2174, 1.0
        %vm2207 = vcmp.gt.f32.partialorder %v2175, 1.0
        %vm2208 = vcmp.gt.f32.partialorder %v2176, 1.0
        %vm2209 = vcmp.gt.f32.partialorder %v2177, 1.0
        %vm2210 = vcmp.gt.f32.partialorder %v2178, 1.0
        %vm2211 = vcmp.gt.f32.partialorder %v2179, 1.0
        %vm2212 = vcmp.gt.f32.partialorder %v2180, 1.0
        %vm2213 = vcmp.gt.f32.partialorder %v2181, 1.0
        %vm2214 = vcmp.gt.f32.partialorder %v2182, 1.0
        %vm2215 = vcmp.gt.f32.partialorder %v2183, 1.0
        %vm2216 = vcmp.gt.f32.partialorder %v2184, 1.0
        %vm2217 = vcmp.gt.f32.partialorder %v2185, 1.0
        %vm2218 = vcmp.gt.f32.partialorder %v2186, 1.0
        %vm2219 = vcmp.gt.f32.partialorder %v2187, 1.0
        %vm2220 = vcmp.gt.f32.partialorder %v2188, 1.0
        %vm2221 = vcmp.gt.f32.partialorder %v2189, 1.0
        %vm2222 = vcmp.gt.f32.partialorder %v2190, 1.0
        %vm2223 = vcmp.gt.f32.partialorder %v2191, 1.0
        %vm2224 = vcmp.gt.f32.partialorder %v2192, 1.0
        %vm2225 = vcmp.gt.f32.partialorder %v2193, 1.0
        %vm2226 = vcmp.gt.f32.partialorder %v2194, 1.0
        %vm2227 = vcmp.gt.f32.partialorder %v2195, 1.0
        %vm2228 = vcmp.gt.f32.partialorder %v2196, 1.0
        %vm2229 = vcmp.gt.f32.partialorder %v2197, 1.0
        %vm2230 = vcmp.gt.f32.partialorder %v2198, 1.0
        %vm2231 = vcmp.gt.f32.partialorder %v2199, 1.0
        %vm2232 = vcmp.gt.f32.partialorder %v2200, 1.0
        %vm2233 = vcmp.gt.f32.partialorder %v2201, 1.0
        %vm2234 = vcmp.gt.f32.partialorder %v2202, 1.0
        %vm2235 = vcmp.gt.f32.partialorder %v2203, 1.0
        %vm2236 = vcmp.gt.f32.partialorder %v2204, 1.0
        %vm2237 = vcmp.gt.f32.partialorder %v2205, 1.0
        %v2238 = vsel %vm2206, 1, 0
        %v2239 = vsel %vm2207, 1, 0
        %v2240 = vsel %vm2208, 1, 0
        %v2241 = vsel %vm2209, 1, 0
        %v2242 = vsel %vm2210, 1, 0
        %v2243 = vsel %vm2211, 1, 0
        %v2244 = vsel %vm2212, 1, 0
        %v2245 = vsel %vm2213, 1, 0
        %v2246 = vsel %vm2214, 1, 0
        %v2247 = vsel %vm2215, 1, 0
        %v2248 = vsel %vm2216, 1, 0
        %v2249 = vsel %vm2217, 1, 0
        %v2250 = vsel %vm2218, 1, 0
        %v2251 = vsel %vm2219, 1, 0
        %v2252 = vsel %vm2220, 1, 0
        %v2253 = vsel %vm2221, 1, 0
        %v2254 = vsel %vm2222, 1, 0
        %v2255 = vsel %vm2223, 1, 0
        %v2256 = vsel %vm2224, 1, 0
        %v2257 = vsel %vm2225, 1, 0
        %v2258 = vsel %vm2226, 1, 0
        %v2259 = vsel %vm2227, 1, 0
        %v2260 = vsel %vm2228, 1, 0
        %v2261 = vsel %vm2229, 1, 0
        %v2262 = vsel %vm2230, 1, 0
        %v2263 = vsel %vm2231, 1, 0
        %v2264 = vsel %vm2232, 1, 0
        %v2265 = vsel %vm2233, 1, 0
        %v2266 = vsel %vm2234, 1, 0
        %v2267 = vsel %vm2235, 1, 0
        %v2268 = vsel %vm2236, 1, 0
        %v2269 = vsel %vm2237, 1, 0
        %v2270 = vcvt.s32.f32 %v2238
        %v2271 = vcvt.s32.f32 %v2239
        %v2272 = vcvt.s32.f32 %v2240
        %v2273 = vcvt.s32.f32 %v2241
        %v2274 = vcvt.s32.f32 %v2242
        %v2275 = vcvt.s32.f32 %v2243
        %v2276 = vcvt.s32.f32 %v2244
        %v2277 = vcvt.s32.f32 %v2245
        %v2278 = vcvt.s32.f32 %v2246
        %v2279 = vcvt.s32.f32 %v2247
        %v2280 = vcvt.s32.f32 %v2248
        %v2281 = vcvt.s32.f32 %v2249
        %v2282 = vcvt.s32.f32 %v2250
        %v2283 = vcvt.s32.f32 %v2251
        %v2284 = vcvt.s32.f32 %v2252
        %v2285 = vcvt.s32.f32 %v2253
        %v2286 = vcvt.s32.f32 %v2254
        %v2287 = vcvt.s32.f32 %v2255
        %v2288 = vcvt.s32.f32 %v2256
        %v2289 = vcvt.s32.f32 %v2257
        %v2290 = vcvt.s32.f32 %v2258
        %v2291 = vcvt.s32.f32 %v2259
        %v2292 = vcvt.s32.f32 %v2260
        %v2293 = vcvt.s32.f32 %v2261
        %v2294 = vcvt.s32.f32 %v2262
        %v2295 = vcvt.s32.f32 %v2263
        %v2296 = vcvt.s32.f32 %v2264
        %v2297 = vcvt.s32.f32 %v2265
        %v2298 = vcvt.s32.f32 %v2266
        %v2299 = vcvt.s32.f32 %v2267
        %v2300 = vcvt.s32.f32 %v2268
        %v2301 = vcvt.s32.f32 %v2269
        %v2302 = vpack.c.bf16 %v2271, %v2270
        %v2303 = vpack.c.bf16 %v2273, %v2272
        %v2304 = vpack.c.bf16 %v2275, %v2274
        %v2305 = vpack.c.bf16 %v2277, %v2276
        %v2306 = vpack.c.bf16 %v2279, %v2278
        %v2307 = vpack.c.bf16 %v2281, %v2280
        %v2308 = vpack.c.bf16 %v2283, %v2282
        %v2309 = vpack.c.bf16 %v2285, %v2284
        %v2310 = vpack.c.bf16 %v2287, %v2286
        %v2311 = vpack.c.bf16 %v2289, %v2288
        %v2312 = vpack.c.bf16 %v2291, %v2290
        %v2313 = vpack.c.bf16 %v2293, %v2292
        %v2314 = vpack.c.bf16 %v2295, %v2294
        %v2315 = vpack.c.bf16 %v2297, %v2296
        %v2316 = vpack.c.bf16 %v2299, %v2298
        %v2317 = vpack.c.bf16 %v2301, %v2300
        %2318 = vmatprep.subr.bf16.mxu0 0
        %2319 = vmatpush1.bf16.msra.mxu0 %v2302
        %2320 = vmatprep.subr.bf16.mxu0 0
        %2321 = vmatpush1.bf16.msra.mxu0 %v2303
        %2322 = vmatprep.subr.bf16.mxu0 0
        %2323 = vmatpush1.bf16.msra.mxu0 %v2304
        %2324 = vmatprep.subr.bf16.mxu0 0
        %2325 = vmatpush1.bf16.msra.mxu0 %v2305
        %2326 = vmatprep.subr.bf16.mxu0 0
        %2327 = vmatpush1.bf16.msra.mxu0 %v2306
        %2328 = vmatprep.subr.bf16.mxu0 0
        %2329 = vmatpush1.bf16.msra.mxu0 %v2307
        %2330 = vmatprep.subr.bf16.mxu0 0
        %2331 = vmatpush1.bf16.msra.mxu0 %v2308
        %2332 = vmatprep.subr.bf16.mxu0 0
        %2333 = vmatpush1.bf16.msra.mxu0 %v2309
        %2334 = vmatprep.subr.bf16.mxu0 0
        %2335 = vmatpush1.bf16.msra.mxu0 %v2310
        %2336 = vmatprep.subr.bf16.mxu0 0
        %2337 = vmatpush1.bf16.msra.mxu0 %v2311
        %2338 = vmatprep.subr.bf16.mxu0 0
        %2339 = vmatpush1.bf16.msra.mxu0 %v2312
        %2340 = vmatprep.subr.bf16.mxu0 0
        %2341 = vmatpush1.bf16.msra.mxu0 %v2313
        %2342 = vmatprep.subr.bf16.mxu0 0
        %2343 = vmatpush1.bf16.msra.mxu0 %v2314
        %2344 = vmatprep.subr.bf16.mxu0 0
        %2345 = vmatpush1.bf16.msra.mxu0 %v2315
        %2346 = vmatprep.subr.bf16.mxu0 0
        %2347 = vmatpush1.bf16.msra.mxu0 %v2316
        %2348 = vmatprep.subr.bf16.mxu0 0
        %2349 = vmatpush1.bf16.msra.mxu0 %v2317
        %2350 = vmatprep.mubr.bf16.mxu0 %v768
        %2351 = vmatmul.mubr.bf16.gmra.mrb[0].mxu0 %v767
        %v2352 = vpop.f32.mrb[0].mxu0
        %v2353 = vadd.f32 0.0, %v2352
        %v2354 = vpop.f32.mrb[0].mxu0
        %v2355 = vpop.f32.mrb[0].mxu0
        %v2356 = vadd.f32 0.0, %v2355
        %v2357 = vpop.f32.mrb[0].mxu0
        %2358 = vmatprep.mubr.bf16.mxu0 %v770
        %2359 = vmatmul.mubr.bf16.gmra.mrb[0].mxu0 %v769
        %v2360 = vpop.f32.mrb[0].mxu0
        %v2361 = vadd.f32 0.0, %v2360
        %v2362 = vpop.f32.mrb[0].mxu0
        %v2363 = vpop.f32.mrb[0].mxu0
        %v2364 = vadd.f32 0.0, %v2363
        %v2365 = vpop.f32.mrb[0].mxu0
        %2366 = vmatprep.mubr.bf16.mxu0 %v772
        %2367 = vmatmul.mubr.bf16.gmra.mrb[0].mxu0 %v771
        %v2368 = vpop.f32.mrb[0].mxu0
        %v2369 = vadd.f32 0.0, %v2368
        %v2370 = vpop.f32.mrb[0].mxu0
        %v2371 = vpop.f32.mrb[0].mxu0
        %v2372 = vadd.f32 0.0, %v2371
        %v2373 = vpop.f32.mrb[0].mxu0
        %2374 = vmatprep.mubr.bf16.mxu0 %v774
        %2375 = vmatmul.mubr.bf16.gmra.mrb[0].mxu0 %v773
        %v2376 = vpop.f32.mrb[0].mxu0
        %v2377 = vadd.f32 0.0, %v2376
        %v2378 = vpop.f32.mrb[0].mxu0
        %v2379 = vpop.f32.mrb[0].mxu0
        %v2380 = vadd.f32 0.0, %v2379
        %v2381 = vpop.f32.mrb[0].mxu0
        %2382 = vdwg.mxu0
        %vm2383 = vcmp.gt.f32.partialorder %v2353, 1.0
        %vm2384 = vcmp.gt.f32.partialorder %v2356, 1.0
        %vm2385 = vcmp.gt.f32.partialorder %v2361, 1.0
        %vm2386 = vcmp.gt.f32.partialorder %v2364, 1.0
        %vm2387 = vcmp.gt.f32.partialorder %v2369, 1.0
        %vm2388 = vcmp.gt.f32.partialorder %v2372, 1.0
        %vm2389 = vcmp.gt.f32.partialorder %v2377, 1.0
        %vm2390 = vcmp.gt.f32.partialorder %v2380, 1.0
        %v2391 = vsel %vm2383, 1, 0
        %v2392 = vsel %vm2384, 1, 0
        %v2393 = vsel %vm2385, 1, 0
        %v2394 = vsel %vm2386, 1, 0
        %v2395 = vsel %vm2387, 1, 0
        %v2396 = vsel %vm2388, 1, 0
        %v2397 = vsel %vm2389, 1, 0
        %v2398 = vsel %vm2390, 1, 0
        %v2399 = vcvt.s32.f32 %v2391
        %v2400 = vcvt.s32.f32 %v2392
        %v2401 = vcvt.s32.f32 %v2393
        %v2402 = vcvt.s32.f32 %v2394
        %v2403 = vcvt.s32.f32 %v2395
        %v2404 = vcvt.s32.f32 %v2396
        %v2405 = vcvt.s32.f32 %v2397
        %v2406 = vcvt.s32.f32 %v2398
        %v2407 = vpack.c.bf16 %v2400, %v2399
        %v2408 = vpack.c.bf16 %v2402, %v2401
        %v2409 = vpack.c.bf16 %v2404, %v2403
        %v2410 = vpack.c.bf16 %v2406, %v2405
        %v2415 = vunpack.c.l.b16 %v2407
        %v2416 = vunpack.c.h.b16 %v2407
        %v2417 = vunpack.c.l.b16 %v2408
        %v2418 = vunpack.c.h.b16 %v2408
        %v2419 = vunpack.c.l.b16 %v2409
        %v2420 = vunpack.c.h.b16 %v2409
        %v2421 = vunpack.c.l.b16 %v2410
        %v2422 = vunpack.c.h.b16 %v2410
        %v2423 = vpack.c.b16 %v2415, %v2415
        %v2424 = vpack.c.b16 %v2416, %v2416
        %v2425 = vpack.c.b16 %v2417, %v2417
        %v2426 = vpack.c.b16 %v2418, %v2418
        %v2427 = vpack.c.b16 %v2419, %v2419
        %v2428 = vpack.c.b16 %v2420, %v2420
        %v2429 = vpack.c.b16 %v2421, %v2421
        %v2430 = vpack.c.b16 %v2422, %v2422
        %s2439 = scalar_lea.vmem %s189, 96 [#allocation5]
        %2440 = vst [vmem:[%s2439] sm:$0xf] %v2423
        %2441 = vst [vmem:[%s2439 + $0x4] sm:$0xf] %v2424
        %2442 = vst [vmem:[%s2439 + $0x8] sm:$0xf] %v2425
        %2443 = vst [vmem:[%s2439 + $0xc] sm:$0xf] %v2426
        %2444 = vst [vmem:[%s2439 + $0x10] sm:$0xf] %v2427
        %2445 = vst [vmem:[%s2439 + $0x14] sm:$0xf] %v2428
        %2446 = vst [vmem:[%s2439 + $0x18] sm:$0xf] %v2429
        %2447 = vst [vmem:[%s2439 + $0x1c] sm:$0xf] %v2430
        %s2448 = sand.u32 %s96, 1
        %s2449 = scalar_lea.sflag [#allocation4], %s2448
        %s2450 = sand.u32 %s96, 1
        %s2451 = smul.addr %s2450, 128
        %s2452 = scalar_lea.vmem [#allocation5], %s2451
        // Predicated region
        $region37: #{tpu_custom_call.1} parent=31 // pred_check
          %p2453 = pneg %p106
        $region38: #{tpu_custom_call.1} parent=31 // pred_check_branch
          %2455 = sbr.rel (%p2453) target = $region40
        $region39: #{tpu_custom_call.1} parent=31 // pred_region
          %s2456 = smul.u32 4, %s20
          %s2458 = ssub.s32 2048, 2048
          %2459 = vsyncadd %s2449, %s2458
          %s2460 = smul.addr %s2456, 8
          %s2461 = smul.addr %s2460, 64
          %s2462 = scalar_lea.hbm %s3, %s2461
          %s2463 = sshll.u32 %s2452, 4
          %s2464 = int_to_ptr.vmem [resolvable:$true] %s2463
          %2469 = dma.vmem_to_hbm [thread:$0]  %s2464, 2048, %s2462, %s2449, 64, 64, 4
        $region40: #{tpu_custom_call.1} parent=31 // pred_fallthru
          _
      $region32: #{tpu_custom_call.1} parent=5 // pred_fallthru
        _
      %p2470 = scmp.le.s32.totalorder 2, %s15
      // Predicated region
      $region41: #{tpu_custom_call.1} parent=5 // pred_check
        %p2471 = pneg %p2470
      $region42: #{tpu_custom_call.1} parent=5 // pred_check_branch
        %2473 = sbr.rel (%p2471) target = $region44
      $region43: #{tpu_custom_call.1} parent=5 // pred_region
        %s2474 = ssub.s32 %s15, 2
        // Predicated region
        $region45: #{tpu_custom_call.1} parent=43 // pred_check
          %p2475 = pneg %p112
        $region46: #{tpu_custom_call.1} parent=43 // pred_check_branch
          %2477 = sbr.rel (%p2475) target = $region48
        $region47: #{tpu_custom_call.1} parent=43 // pred_region
          %s2478 = sand.u32 %s97, 1
          %s2479 = scalar_lea.sflag [#allocation4], %s2478
          %s2480 = sand.u32 %s97, 1
          %s2481 = smul.addr %s2480, 128
          %s2482 = scalar_lea.vmem [#allocation5], %s2481
          %2483 = dma.done %s2479, 2048
        $region48: #{tpu_custom_call.1} parent=43 // pred_fallthru
          _
      $region44: #{tpu_custom_call.1} parent=5 // pred_fallthru
        _
    $region6: #{tpu_custom_call.1} parent=1 // loop_footer
      %s19 = sadd.s32 1, %s15
    $region7: #{tpu_custom_call.1} parent=1 // loop_footer_branch
      %14 = sbr.rel target = $region3
    $region8: #{tpu_custom_call.1} parent=1 // loop_exit
      _
    %2484 = vsyncpa [#allocation3], 1
    %s2485 = scalar_lea.sflag [#allocation3], 1
    %2486 = vsyncpa %s2485, 1
    %2487 = vsyncpa [#allocation4], 1
    %s2488 = scalar_lea.sflag [#allocation4], 1
    %2489 = vsyncpa %s2488, 1

</llo_original>
